<compile_context>
chip_gen: v7x
topology: tpu7x:2x2x1
jax: 0.10.0
libtpu: 0.0.40
codegen_flags: <defaults>
</compile_context>

<pallas_src>
import jax
import jax.numpy as jnp
from jax.experimental import pallas as pl
from jax.experimental.pallas import tpu as pltpu


def _make_kernel(H, W, NB):
    Ho, Wo = H + 2, W + 2

    def kernel(w_ref, b_ref, x_ref, z_ref, o_ref, xpad_ref):
        """One batch block of NB elements.

        w_ref   : VMEM (Cout, Cin)   f32  1x1 conv weights
        b_ref   : VMEM (Cout, 1)     f32  bias column
        x_ref   : VMEM (NB, Cin, H*W) f32 unpadded input pixels (lane-dense)
        z_ref   : VMEM (NB, Cout, P)  f32 additive tensor (y=True branch)
        o_ref   : VMEM (NB, Cout, P)  f32 output, P = Ho*Wo
        xpad_ref: VMEM (Cin, P)       f32 scratch: zero-padded flat input
        """
        w = w_ref[...]          # (Cout, Cin)
        bias = b_ref[...]       # (Cout, 1) -> broadcasts along lanes

        # Zero once: border lanes stay zero; interior lanes are fully
        # overwritten for every batch element below.
        xpad_ref[...] = jnp.zeros_like(xpad_ref)

        for b in range(NB):
            # Fused zero-padding: scatter each unpadded row (width W) into its
            # place inside the padded flat image (row i -> lanes starting at
            # (i+1)*Wo + 1).  Static slices only.
            for i in range(H):
                dst = (i + 1) * Wo + 1
                xpad_ref[:, dst:dst + W] = x_ref[b, :, i * W:(i + 1) * W]

            # Single 2D MXU contraction over channels; border lanes of xpad
            # are zero so the border correctly reduces to bias + z.
            conv = jnp.dot(w, xpad_ref[...], preferred_element_type=jnp.float32)

            # One full-tile, lane-dense store per batch element.
            o_ref[b] = (z_ref[b] + bias + conv).astype(o_ref.dtype)

    return kernel


def conv1x1_pad1_add(x_nchw, weight, bias, z_nchw, *, max_batch_block=8):
    """1x1 conv, stride 1, padding=1, plus elementwise add of z, via Pallas.

    x_nchw : (N, Cin, H, W)
    weight : (Cout, Cin, 1, 1) or (Cout, Cin)
    bias   : (Cout,)
    z_nchw : (N, Cout, H+2, W+2)
    returns: (N, Cout, H+2, W+2)
    """
    N, Cin, H, W = x_nchw.shape
    weight2d = weight.reshape(weight.shape[0], Cin)
    Cout = weight2d.shape[0]
    Ho, Wo = H + 2, W + 2
    P = Ho * Wo

    # Batch-block size: largest divisor of N not exceeding max_batch_block so
    # every grid step processes a full block (amortizes per-step overhead).
    NB = 1
    for cand in range(min(N, max_batch_block), 0, -1):
        if N % cand == 0:
            NB = cand
            break

    # All free reshapes (pixel axes are already last / contiguous in NCHW).
    x_rows = x_nchw.astype(jnp.float32).reshape(N, Cin, H * W)
    z_rows = z_nchw.astype(jnp.float32).reshape(N, Cout, P)
    w2 = weight2d.astype(jnp.float32)
    b2 = bias.astype(jnp.float32).reshape(Cout, 1)

    kernel = _make_kernel(H, W, NB)

    out_rows = pl.pallas_call(
        kernel,
        out_shape=jax.ShapeDtypeStruct((N, Cout, P), jnp.float32),
        grid_spec=pltpu.PrefetchScalarGridSpec(
            num_scalar_prefetch=0,
            grid=(N // NB,),
            in_specs=[
                pl.BlockSpec((Cout, Cin), lambda n: (0, 0)),         # weights
                pl.BlockSpec((Cout, 1), lambda n: (0, 0)),           # bias
                pl.BlockSpec((NB, Cin, H * W), lambda n: (n, 0, 0)),  # x
                pl.BlockSpec((NB, Cout, P), lambda n: (n, 0, 0)),     # z
            ],
            out_specs=pl.BlockSpec((NB, Cout, P), lambda n: (n, 0, 0)),
            scratch_shapes=[pltpu.VMEM((Cin, P), jnp.float32)],
        ),
        input_output_aliases={3: 0},   # reuse z's HBM buffer for the output
        compiler_params=pltpu.CompilerParams(
            dimension_semantics=("parallel",)),
    )(w2, b2, x_rows, z_rows)

    # Back to NCHW: a free reshape (no transpose needed).
    return out_rows.reshape(N, Cout, Ho, Wo)


def reference(x_nchw, weight, bias, z_nchw):
    """Pure-JAX reference for correctness checking."""
    w2 = weight.reshape(weight.shape[0], x_nchw.shape[1])
    x_pad = jnp.pad(x_nchw, ((0, 0), (0, 0), (1, 1), (1, 1)))
    v1 = jnp.einsum("nchw,oc->nohw", x_pad, w2) + bias[None, :, None, None]
    return v1 + z_nchw


if __name__ == "__main__":
    key = jax.random.PRNGKey(0)
    k_x, k_w, k_b, k_z = jax.random.split(key, 4)

    # Small shapes consistent with the module: Conv2d(6, 9, 1, padding=1)
    N, Cin, H, W = 4, 6, 16, 16
    Cout = 9
    Ho, Wo = H + 2, W + 2

    x1 = jax.random.normal(k_x, (N, Cin, H, W), dtype=jnp.float32)
    weight = jax.random.normal(k_w, (Cout, Cin, 1, 1), dtype=jnp.float32) * 0.1
    bias = jax.random.normal(k_b, (Cout,), dtype=jnp.float32) * 0.1
    # y=True branch: z has the same shape as the conv output.
    z = jax.random.normal(k_z, (N, Cout, Ho, Wo), dtype=jnp.float32)

    ref = reference(x1, weight, bias, z)

    out = conv1x1_pad1_add(x1, weight, bias, z)
    out = jax.block_until_ready(out)

    assert out.shape == (N, Cout, Ho, Wo)
    assert jnp.allclose(out, ref, atol=1e-4, rtol=1e-4)
    print("KERNEL_OK")
</pallas_src>

<mosaic_0001>
module attributes {stable_mosaic.version = 11 : i64} {
  func.func @kernel(%arg0: i32, %arg1: memref<9x6xf32, #tpu.memory_space<vmem>>, %arg2: memref<9x1xf32, #tpu.memory_space<vmem>>, %arg3: memref<4x6x256xf32, #tpu.memory_space<vmem>>, %arg4: memref<4x9x324xf32, #tpu.memory_space<vmem>>, %arg5: memref<4x9x324xf32, #tpu.memory_space<vmem>>, %arg6: memref<6x324xf32, #tpu.memory_space<vmem>>) attributes {dimension_semantics = [#tpu.dimension_semantics<parallel>], iteration_bounds = array<i64: 1>, scalar_prefetch = 0 : i64, scratch_operands = 1 : i64, tpu.core_type = #tpu.core_type<tc>, window_params = [{pipeline_mode = #tpu.pipeline_mode<synchronous>, transform_indices = @transform_0, window_bounds = array<i64: 9, 6>}, {pipeline_mode = #tpu.pipeline_mode<synchronous>, transform_indices = @transform_1, window_bounds = array<i64: 9, 1>}, {transform_indices = @transform_2, window_bounds = array<i64: 4, 6, 256>}, {transform_indices = @transform_3, window_bounds = array<i64: 4, 9, 324>}, {transform_indices = @transform_4, window_bounds = array<i64: 4, 9, 324>}]} {
    %c0 = arith.constant 0 : index
    %c0_0 = arith.constant 0 : index
    %0 = vector.load %arg1[%c0, %c0_0] : memref<9x6xf32, #tpu.memory_space<vmem>>, vector<9x6xf32>
    %c0_1 = arith.constant 0 : index
    %c0_2 = arith.constant 0 : index
    %1 = vector.load %arg2[%c0_1, %c0_2] : memref<9x1xf32, #tpu.memory_space<vmem>>, vector<9x1xf32>
    %cst = arith.constant 0.000000e+00 : f32
    %2 = vector.broadcast %cst : f32 to vector<6x324xf32>
    %c0_3 = arith.constant 0 : index
    %c0_4 = arith.constant 0 : index
    %3 = vector.load %arg6[%c0_3, %c0_4] : memref<6x324xf32, #tpu.memory_space<vmem>>, vector<6x324xf32>
    tpu.vector_store %arg6[%c0_3, %c0_4], %2 {strides = array<i32>} : memref<6x324xf32, #tpu.memory_space<vmem>>, vector<6x324xf32>,
    %c0_5 = arith.constant 0 : index
    %c0_6 = arith.constant 0 : index
    %c0_7 = arith.constant 0 : index
    %4 = vector.load %arg3[%c0_5, %c0_6, %c0_7] : memref<4x6x256xf32, #tpu.memory_space<vmem>>, vector<1x6x16xf32>
    %5 = vector.shape_cast %4 : vector<1x6x16xf32> to vector<6x16xf32>
    %c0_8 = arith.constant 0 : index
    %c19 = arith.constant 19 : index
    %6 = vector.load %arg6[%c0_8, %c19] : memref<6x324xf32, #tpu.memory_space<vmem>>, vector<6x16xf32>
    tpu.vector_store %arg6[%c0_8, %c19], %5 {strides = array<i32>} : memref<6x324xf32, #tpu.memory_space<vmem>>, vector<6x16xf32>,
    %c0_9 = arith.constant 0 : index
    %c0_10 = arith.constant 0 : index
    %c16 = arith.constant 16 : index
    %7 = vector.load %arg3[%c0_9, %c0_10, %c16] : memref<4x6x256xf32, #tpu.memory_space<vmem>>, vector<1x6x16xf32>
    %8 = vector.shape_cast %7 : vector<1x6x16xf32> to vector<6x16xf32>
    %c0_11 = arith.constant 0 : index
    %c37 = arith.constant 37 : index
    %9 = vector.load %arg6[%c0_11, %c37] : memref<6x324xf32, #tpu.memory_space<vmem>>, vector<6x16xf32>
    tpu.vector_store %arg6[%c0_11, %c37], %8 {strides = array<i32>} : memref<6x324xf32, #tpu.memory_space<vmem>>, vector<6x16xf32>,
    %c0_12 = arith.constant 0 : index
    %c0_13 = arith.constant 0 : index
    %c32 = arith.constant 32 : index
    %10 = vector.load %arg3[%c0_12, %c0_13, %c32] : memref<4x6x256xf32, #tpu.memory_space<vmem>>, vector<1x6x16xf32>
    %11 = vector.shape_cast %10 : vector<1x6x16xf32> to vector<6x16xf32>
    %c0_14 = arith.constant 0 : index
    %c55 = arith.constant 55 : index
    %12 = vector.load %arg6[%c0_14, %c55] : memref<6x324xf32, #tpu.memory_space<vmem>>, vector<6x16xf32>
    tpu.vector_store %arg6[%c0_14, %c55], %11 {strides = array<i32>} : memref<6x324xf32, #tpu.memory_space<vmem>>, vector<6x16xf32>,
    %c0_15 = arith.constant 0 : index
    %c0_16 = arith.constant 0 : index
    %c48 = arith.constant 48 : index
    %13 = vector.load %arg3[%c0_15, %c0_16, %c48] : memref<4x6x256xf32, #tpu.memory_space<vmem>>, vector<1x6x16xf32>
    %14 = vector.shape_cast %13 : vector<1x6x16xf32> to vector<6x16xf32>
    %c0_17 = arith.constant 0 : index
    %c73 = arith.constant 73 : index
    %15 = vector.load %arg6[%c0_17, %c73] : memref<6x324xf32, #tpu.memory_space<vmem>>, vector<6x16xf32>
    tpu.vector_store %arg6[%c0_17, %c73], %14 {strides = array<i32>} : memref<6x324xf32, #tpu.memory_space<vmem>>, vector<6x16xf32>,
    %c0_18 = arith.constant 0 : index
    %c0_19 = arith.constant 0 : index
    %c64 = arith.constant 64 : index
    %16 = vector.load %arg3[%c0_18, %c0_19, %c64] : memref<4x6x256xf32, #tpu.memory_space<vmem>>, vector<1x6x16xf32>
    %17 = vector.shape_cast %16 : vector<1x6x16xf32> to vector<6x16xf32>
    %c0_20 = arith.constant 0 : index
    %c91 = arith.constant 91 : index
    %18 = vector.load %arg6[%c0_20, %c91] : memref<6x324xf32, #tpu.memory_space<vmem>>, vector<6x16xf32>
    tpu.vector_store %arg6[%c0_20, %c91], %17 {strides = array<i32>} : memref<6x324xf32, #tpu.memory_space<vmem>>, vector<6x16xf32>,
    %c0_21 = arith.constant 0 : index
    %c0_22 = arith.constant 0 : index
    %c80 = arith.constant 80 : index
    %19 = vector.load %arg3[%c0_21, %c0_22, %c80] : memref<4x6x256xf32, #tpu.memory_space<vmem>>, vector<1x6x16xf32>
    %20 = vector.shape_cast %19 : vector<1x6x16xf32> to vector<6x16xf32>
    %c0_23 = arith.constant 0 : index
    %c109 = arith.constant 109 : index
    %21 = vector.load %arg6[%c0_23, %c109] : memref<6x324xf32, #tpu.memory_space<vmem>>, vector<6x16xf32>
    tpu.vector_store %arg6[%c0_23, %c109], %20 {strides = array<i32>} : memref<6x324xf32, #tpu.memory_space<vmem>>, vector<6x16xf32>,
    %c0_24 = arith.constant 0 : index
    %c0_25 = arith.constant 0 : index
    %c96 = arith.constant 96 : index
    %22 = vector.load %arg3[%c0_24, %c0_25, %c96] : memref<4x6x256xf32, #tpu.memory_space<vmem>>, vector<1x6x16xf32>
    %23 = vector.shape_cast %22 : vector<1x6x16xf32> to vector<6x16xf32>
    %c0_26 = arith.constant 0 : index
    %c127 = arith.constant 127 : index
    %24 = vector.load %arg6[%c0_26, %c127] : memref<6x324xf32, #tpu.memory_space<vmem>>, vector<6x16xf32>
    tpu.vector_store %arg6[%c0_26, %c127], %23 {strides = array<i32>} : memref<6x324xf32, #tpu.memory_space<vmem>>, vector<6x16xf32>,
    %c0_27 = arith.constant 0 : index
    %c0_28 = arith.constant 0 : index
    %c112 = arith.constant 112 : index
    %25 = vector.load %arg3[%c0_27, %c0_28, %c112] : memref<4x6x256xf32, #tpu.memory_space<vmem>>, vector<1x6x16xf32>
    %26 = vector.shape_cast %25 : vector<1x6x16xf32> to vector<6x16xf32>
    %c0_29 = arith.constant 0 : index
    %c145 = arith.constant 145 : index
    %27 = vector.load %arg6[%c0_29, %c145] : memref<6x324xf32, #tpu.memory_space<vmem>>, vector<6x16xf32>
    tpu.vector_store %arg6[%c0_29, %c145], %26 {strides = array<i32>} : memref<6x324xf32, #tpu.memory_space<vmem>>, vector<6x16xf32>,
    %c0_30 = arith.constant 0 : index
    %c0_31 = arith.constant 0 : index
    %c128 = arith.constant 128 : index
    %28 = vector.load %arg3[%c0_30, %c0_31, %c128] : memref<4x6x256xf32, #tpu.memory_space<vmem>>, vector<1x6x16xf32>
    %29 = vector.shape_cast %28 : vector<1x6x16xf32> to vector<6x16xf32>
    %c0_32 = arith.constant 0 : index
    %c163 = arith.constant 163 : index
    %30 = vector.load %arg6[%c0_32, %c163] : memref<6x324xf32, #tpu.memory_space<vmem>>, vector<6x16xf32>
    tpu.vector_store %arg6[%c0_32, %c163], %29 {strides = array<i32>} : memref<6x324xf32, #tpu.memory_space<vmem>>, vector<6x16xf32>,
    %c0_33 = arith.constant 0 : index
    %c0_34 = arith.constant 0 : index
    %c144 = arith.constant 144 : index
    %31 = vector.load %arg3[%c0_33, %c0_34, %c144] : memref<4x6x256xf32, #tpu.memory_space<vmem>>, vector<1x6x16xf32>
    %32 = vector.shape_cast %31 : vector<1x6x16xf32> to vector<6x16xf32>
    %c0_35 = arith.constant 0 : index
    %c181 = arith.constant 181 : index
    %33 = vector.load %arg6[%c0_35, %c181] : memref<6x324xf32, #tpu.memory_space<vmem>>, vector<6x16xf32>
    tpu.vector_store %arg6[%c0_35, %c181], %32 {strides = array<i32>} : memref<6x324xf32, #tpu.memory_space<vmem>>, vector<6x16xf32>,
    %c0_36 = arith.constant 0 : index
    %c0_37 = arith.constant 0 : index
    %c160 = arith.constant 160 : index
    %34 = vector.load %arg3[%c0_36, %c0_37, %c160] : memref<4x6x256xf32, #tpu.memory_space<vmem>>, vector<1x6x16xf32>
    %35 = vector.shape_cast %34 : vector<1x6x16xf32> to vector<6x16xf32>
    %c0_38 = arith.constant 0 : index
    %c199 = arith.constant 199 : index
    %36 = vector.load %arg6[%c0_38, %c199] : memref<6x324xf32, #tpu.memory_space<vmem>>, vector<6x16xf32>
    tpu.vector_store %arg6[%c0_38, %c199], %35 {strides = array<i32>} : memref<6x324xf32, #tpu.memory_space<vmem>>, vector<6x16xf32>,
    %c0_39 = arith.constant 0 : index
    %c0_40 = arith.constant 0 : index
    %c176 = arith.constant 176 : index
    %37 = vector.load %arg3[%c0_39, %c0_40, %c176] : memref<4x6x256xf32, #tpu.memory_space<vmem>>, vector<1x6x16xf32>
    %38 = vector.shape_cast %37 : vector<1x6x16xf32> to vector<6x16xf32>
    %c0_41 = arith.constant 0 : index
    %c217 = arith.constant 217 : index
    %39 = vector.load %arg6[%c0_41, %c217] : memref<6x324xf32, #tpu.memory_space<vmem>>, vector<6x16xf32>
    tpu.vector_store %arg6[%c0_41, %c217], %38 {strides = array<i32>} : memref<6x324xf32, #tpu.memory_space<vmem>>, vector<6x16xf32>,
    %c0_42 = arith.constant 0 : index
    %c0_43 = arith.constant 0 : index
    %c192 = arith.constant 192 : index
    %40 = vector.load %arg3[%c0_42, %c0_43, %c192] : memref<4x6x256xf32, #tpu.memory_space<vmem>>, vector<1x6x16xf32>
    %41 = vector.shape_cast %40 : vector<1x6x16xf32> to vector<6x16xf32>
    %c0_44 = arith.constant 0 : index
    %c235 = arith.constant 235 : index
    %42 = vector.load %arg6[%c0_44, %c235] : memref<6x324xf32, #tpu.memory_space<vmem>>, vector<6x16xf32>
    tpu.vector_store %arg6[%c0_44, %c235], %41 {strides = array<i32>} : memref<6x324xf32, #tpu.memory_space<vmem>>, vector<6x16xf32>,
    %c0_45 = arith.constant 0 : index
    %c0_46 = arith.constant 0 : index
    %c208 = arith.constant 208 : index
    %43 = vector.load %arg3[%c0_45, %c0_46, %c208] : memref<4x6x256xf32, #tpu.memory_space<vmem>>, vector<1x6x16xf32>
    %44 = vector.shape_cast %43 : vector<1x6x16xf32> to vector<6x16xf32>
    %c0_47 = arith.constant 0 : index
    %c253 = arith.constant 253 : index
    %45 = vector.load %arg6[%c0_47, %c253] : memref<6x324xf32, #tpu.memory_space<vmem>>, vector<6x16xf32>
    tpu.vector_store %arg6[%c0_47, %c253], %44 {strides = array<i32>} : memref<6x324xf32, #tpu.memory_space<vmem>>, vector<6x16xf32>,
    %c0_48 = arith.constant 0 : index
    %c0_49 = arith.constant 0 : index
    %c224 = arith.constant 224 : index
    %46 = vector.load %arg3[%c0_48, %c0_49, %c224] : memref<4x6x256xf32, #tpu.memory_space<vmem>>, vector<1x6x16xf32>
    %47 = vector.shape_cast %46 : vector<1x6x16xf32> to vector<6x16xf32>
    %c0_50 = arith.constant 0 : index
    %c271 = arith.constant 271 : index
    %48 = vector.load %arg6[%c0_50, %c271] : memref<6x324xf32, #tpu.memory_space<vmem>>, vector<6x16xf32>
    tpu.vector_store %arg6[%c0_50, %c271], %47 {strides = array<i32>} : memref<6x324xf32, #tpu.memory_space<vmem>>, vector<6x16xf32>,
    %c0_51 = arith.constant 0 : index
    %c0_52 = arith.constant 0 : index
    %c240 = arith.constant 240 : index
    %49 = vector.load %arg3[%c0_51, %c0_52, %c240] : memref<4x6x256xf32, #tpu.memory_space<vmem>>, vector<1x6x16xf32>
    %50 = vector.shape_cast %49 : vector<1x6x16xf32> to vector<6x16xf32>
    %c0_53 = arith.constant 0 : index
    %c289 = arith.constant 289 : index
    %51 = vector.load %arg6[%c0_53, %c289] : memref<6x324xf32, #tpu.memory_space<vmem>>, vector<6x16xf32>
    tpu.vector_store %arg6[%c0_53, %c289], %50 {strides = array<i32>} : memref<6x324xf32, #tpu.memory_space<vmem>>, vector<6x16xf32>,
    %c0_54 = arith.constant 0 : index
    %c0_55 = arith.constant 0 : index
    %52 = vector.load %arg6[%c0_54, %c0_55] : memref<6x324xf32, #tpu.memory_space<vmem>>, vector<6x324xf32>
    %cst_56 = arith.constant dense<0.000000e+00> : vector<9x324xf32>
    %53 = tpu.matmul %0, %52, %cst_56 {dimension_numbers = #tpu.dot_dimension_numbers<[1], [0], [0], [1], [0, 0, 1, 1], [], []>} : vector<9x6xf32>, vector<6x324xf32>, vector<9x324xf32> -> vector<9x324xf32>
    %c0_57 = arith.constant 0 : index
    %c0_58 = arith.constant 0 : index
    %c0_59 = arith.constant 0 : index
    %54 = vector.load %arg4[%c0_57, %c0_58, %c0_59] : memref<4x9x324xf32, #tpu.memory_space<vmem>>, vector<1x9x324xf32>
    %55 = vector.shape_cast %54 : vector<1x9x324xf32> to vector<9x324xf32>
    %56 = vector.broadcast %1 : vector<9x1xf32> to vector<9x324xf32>
    %57 = arith.addf %55, %56 : vector<9x324xf32>
    %58 = arith.addf %57, %53 : vector<9x324xf32>
    %c0_60 = arith.constant 0 : index
    %c0_61 = arith.constant 0 : index
    %c0_62 = arith.constant 0 : index
    %59 = vector.load %arg5[%c0_60, %c0_61, %c0_62] : memref<4x9x324xf32, #tpu.memory_space<vmem>>, vector<1x9x324xf32>
    %60 = vector.shape_cast %59 : vector<1x9x324xf32> to vector<9x324xf32>
    %61 = vector.shape_cast %58 : vector<9x324xf32> to vector<1x9x324xf32>
    tpu.vector_store %arg5[%c0_60, %c0_61, %c0_62], %61 {strides = array<i32>} : memref<4x9x324xf32, #tpu.memory_space<vmem>>, vector<1x9x324xf32>,
    %c1 = arith.constant 1 : index
    %c0_63 = arith.constant 0 : index
    %c0_64 = arith.constant 0 : index
    %62 = vector.load %arg3[%c1, %c0_63, %c0_64] : memref<4x6x256xf32, #tpu.memory_space<vmem>>, vector<1x6x16xf32>
    %63 = vector.shape_cast %62 : vector<1x6x16xf32> to vector<6x16xf32>
    %c0_65 = arith.constant 0 : index
    %c19_66 = arith.constant 19 : index
    %64 = vector.load %arg6[%c0_65, %c19_66] : memref<6x324xf32, #tpu.memory_space<vmem>>, vector<6x16xf32>
    tpu.vector_store %arg6[%c0_65, %c19_66], %63 {strides = array<i32>} : memref<6x324xf32, #tpu.memory_space<vmem>>, vector<6x16xf32>,
    %c1_67 = arith.constant 1 : index
    %c0_68 = arith.constant 0 : index
    %c16_69 = arith.constant 16 : index
    %65 = vector.load %arg3[%c1_67, %c0_68, %c16_69] : memref<4x6x256xf32, #tpu.memory_space<vmem>>, vector<1x6x16xf32>
    %66 = vector.shape_cast %65 : vector<1x6x16xf32> to vector<6x16xf32>
    %c0_70 = arith.constant 0 : index
    %c37_71 = arith.constant 37 : index
    %67 = vector.load %arg6[%c0_70, %c37_71] : memref<6x324xf32, #tpu.memory_space<vmem>>, vector<6x16xf32>
    tpu.vector_store %arg6[%c0_70, %c37_71], %66 {strides = array<i32>} : memref<6x324xf32, #tpu.memory_space<vmem>>, vector<6x16xf32>,
    %c1_72 = arith.constant 1 : index
    %c0_73 = arith.constant 0 : index
    %c32_74 = arith.constant 32 : index
    %68 = vector.load %arg3[%c1_72, %c0_73, %c32_74] : memref<4x6x256xf32, #tpu.memory_space<vmem>>, vector<1x6x16xf32>
    %69 = vector.shape_cast %68 : vector<1x6x16xf32> to vector<6x16xf32>
    %c0_75 = arith.constant 0 : index
    %c55_76 = arith.constant 55 : index
    %70 = vector.load %arg6[%c0_75, %c55_76] : memref<6x324xf32, #tpu.memory_space<vmem>>, vector<6x16xf32>
    tpu.vector_store %arg6[%c0_75, %c55_76], %69 {strides = array<i32>} : memref<6x324xf32, #tpu.memory_space<vmem>>, vector<6x16xf32>,
    %c1_77 = arith.constant 1 : index
    %c0_78 = arith.constant 0 : index
    %c48_79 = arith.constant 48 : index
    %71 = vector.load %arg3[%c1_77, %c0_78, %c48_79] : memref<4x6x256xf32, #tpu.memory_space<vmem>>, vector<1x6x16xf32>
    %72 = vector.shape_cast %71 : vector<1x6x16xf32> to vector<6x16xf32>
    %c0_80 = arith.constant 0 : index
    %c73_81 = arith.constant 73 : index
    %73 = vector.load %arg6[%c0_80, %c73_81] : memref<6x324xf32, #tpu.memory_space<vmem>>, vector<6x16xf32>
    tpu.vector_store %arg6[%c0_80, %c73_81], %72 {strides = array<i32>} : memref<6x324xf32, #tpu.memory_space<vmem>>, vector<6x16xf32>,
    %c1_82 = arith.constant 1 : index
    %c0_83 = arith.constant 0 : index
    %c64_84 = arith.constant 64 : index
    %74 = vector.load %arg3[%c1_82, %c0_83, %c64_84] : memref<4x6x256xf32, #tpu.memory_space<vmem>>, vector<1x6x16xf32>
    %75 = vector.shape_cast %74 : vector<1x6x16xf32> to vector<6x16xf32>
    %c0_85 = arith.constant 0 : index
    %c91_86 = arith.constant 91 : index
    %76 = vector.load %arg6[%c0_85, %c91_86] : memref<6x324xf32, #tpu.memory_space<vmem>>, vector<6x16xf32>
    tpu.vector_store %arg6[%c0_85, %c91_86], %75 {strides = array<i32>} : memref<6x324xf32, #tpu.memory_space<vmem>>, vector<6x16xf32>,
    %c1_87 = arith.constant 1 : index
    %c0_88 = arith.constant 0 : index
    %c80_89 = arith.constant 80 : index
    %77 = vector.load %arg3[%c1_87, %c0_88, %c80_89] : memref<4x6x256xf32, #tpu.memory_space<vmem>>, vector<1x6x16xf32>
    %78 = vector.shape_cast %77 : vector<1x6x16xf32> to vector<6x16xf32>
    %c0_90 = arith.constant 0 : index
    %c109_91 = arith.constant 109 : index
    %79 = vector.load %arg6[%c0_90, %c109_91] : memref<6x324xf32, #tpu.memory_space<vmem>>, vector<6x16xf32>
    tpu.vector_store %arg6[%c0_90, %c109_91], %78 {strides = array<i32>} : memref<6x324xf32, #tpu.memory_space<vmem>>, vector<6x16xf32>,
    %c1_92 = arith.constant 1 : index
    %c0_93 = arith.constant 0 : index
    %c96_94 = arith.constant 96 : index
    %80 = vector.load %arg3[%c1_92, %c0_93, %c96_94] : memref<4x6x256xf32, #tpu.memory_space<vmem>>, vector<1x6x16xf32>
    %81 = vector.shape_cast %80 : vector<1x6x16xf32> to vector<6x16xf32>
    %c0_95 = arith.constant 0 : index
    %c127_96 = arith.constant 127 : index
    %82 = vector.load %arg6[%c0_95, %c127_96] : memref<6x324xf32, #tpu.memory_space<vmem>>, vector<6x16xf32>
    tpu.vector_store %arg6[%c0_95, %c127_96], %81 {strides = array<i32>} : memref<6x324xf32, #tpu.memory_space<vmem>>, vector<6x16xf32>,
    %c1_97 = arith.constant 1 : index
    %c0_98 = arith.constant 0 : index
    %c112_99 = arith.constant 112 : index
    %83 = vector.load %arg3[%c1_97, %c0_98, %c112_99] : memref<4x6x256xf32, #tpu.memory_space<vmem>>, vector<1x6x16xf32>
    %84 = vector.shape_cast %83 : vector<1x6x16xf32> to vector<6x16xf32>
    %c0_100 = arith.constant 0 : index
    %c145_101 = arith.constant 145 : index
    %85 = vector.load %arg6[%c0_100, %c145_101] : memref<6x324xf32, #tpu.memory_space<vmem>>, vector<6x16xf32>
    tpu.vector_store %arg6[%c0_100, %c145_101], %84 {strides = array<i32>} : memref<6x324xf32, #tpu.memory_space<vmem>>, vector<6x16xf32>,
    %c1_102 = arith.constant 1 : index
    %c0_103 = arith.constant 0 : index
    %c128_104 = arith.constant 128 : index
    %86 = vector.load %arg3[%c1_102, %c0_103, %c128_104] : memref<4x6x256xf32, #tpu.memory_space<vmem>>, vector<1x6x16xf32>
    %87 = vector.shape_cast %86 : vector<1x6x16xf32> to vector<6x16xf32>
    %c0_105 = arith.constant 0 : index
    %c163_106 = arith.constant 163 : index
    %88 = vector.load %arg6[%c0_105, %c163_106] : memref<6x324xf32, #tpu.memory_space<vmem>>, vector<6x16xf32>
    tpu.vector_store %arg6[%c0_105, %c163_106], %87 {strides = array<i32>} : memref<6x324xf32, #tpu.memory_space<vmem>>, vector<6x16xf32>,
    %c1_107 = arith.constant 1 : index
    %c0_108 = arith.constant 0 : index
    %c144_109 = arith.constant 144 : index
    %89 = vector.load %arg3[%c1_107, %c0_108, %c144_109] : memref<4x6x256xf32, #tpu.memory_space<vmem>>, vector<1x6x16xf32>
    %90 = vector.shape_cast %89 : vector<1x6x16xf32> to vector<6x16xf32>
    %c0_110 = arith.constant 0 : index
    %c181_111 = arith.constant 181 : index
    %91 = vector.load %arg6[%c0_110, %c181_111] : memref<6x324xf32, #tpu.memory_space<vmem>>, vector<6x16xf32>
    tpu.vector_store %arg6[%c0_110, %c181_111], %90 {strides = array<i32>} : memref<6x324xf32, #tpu.memory_space<vmem>>, vector<6x16xf32>,
    %c1_112 = arith.constant 1 : index
    %c0_113 = arith.constant 0 : index
    %c160_114 = arith.constant 160 : index
    %92 = vector.load %arg3[%c1_112, %c0_113, %c160_114] : memref<4x6x256xf32, #tpu.memory_space<vmem>>, vector<1x6x16xf32>
    %93 = vector.shape_cast %92 : vector<1x6x16xf32> to vector<6x16xf32>
    %c0_115 = arith.constant 0 : index
    %c199_116 = arith.constant 199 : index
    %94 = vector.load %arg6[%c0_115, %c199_116] : memref<6x324xf32, #tpu.memory_space<vmem>>, vector<6x16xf32>
    tpu.vector_store %arg6[%c0_115, %c199_116], %93 {strides = array<i32>} : memref<6x324xf32, #tpu.memory_space<vmem>>, vector<6x16xf32>,
    %c1_117 = arith.constant 1 : index
    %c0_118 = arith.constant 0 : index
    %c176_119 = arith.constant 176 : index
    %95 = vector.load %arg3[%c1_117, %c0_118, %c176_119] : memref<4x6x256xf32, #tpu.memory_space<vmem>>, vector<1x6x16xf32>
    %96 = vector.shape_cast %95 : vector<1x6x16xf32> to vector<6x16xf32>
    %c0_120 = arith.constant 0 : index
    %c217_121 = arith.constant 217 : index
    %97 = vector.load %arg6[%c0_120, %c217_121] : memref<6x324xf32, #tpu.memory_space<vmem>>, vector<6x16xf32>
    tpu.vector_store %arg6[%c0_120, %c217_121], %96 {strides = array<i32>} : memref<6x324xf32, #tpu.memory_space<vmem>>, vector<6x16xf32>,
    %c1_122 = arith.constant 1 : index
    %c0_123 = arith.constant 0 : index
    %c192_124 = arith.constant 192 : index
    %98 = vector.load %arg3[%c1_122, %c0_123, %c192_124] : memref<4x6x256xf32, #tpu.memory_space<vmem>>, vector<1x6x16xf32>
    %99 = vector.shape_cast %98 : vector<1x6x16xf32> to vector<6x16xf32>
    %c0_125 = arith.constant 0 : index
    %c235_126 = arith.constant 235 : index
    %100 = vector.load %arg6[%c0_125, %c235_126] : memref<6x324xf32, #tpu.memory_space<vmem>>, vector<6x16xf32>
    tpu.vector_store %arg6[%c0_125, %c235_126], %99 {strides = array<i32>} : memref<6x324xf32, #tpu.memory_space<vmem>>, vector<6x16xf32>,
    %c1_127 = arith.constant 1 : index
    %c0_128 = arith.constant 0 : index
    %c208_129 = arith.constant 208 : index
    %101 = vector.load %arg3[%c1_127, %c0_128, %c208_129] : memref<4x6x256xf32, #tpu.memory_space<vmem>>, vector<1x6x16xf32>
    %102 = vector.shape_cast %101 : vector<1x6x16xf32> to vector<6x16xf32>
    %c0_130 = arith.constant 0 : index
    %c253_131 = arith.constant 253 : index
    %103 = vector.load %arg6[%c0_130, %c253_131] : memref<6x324xf32, #tpu.memory_space<vmem>>, vector<6x16xf32>
    tpu.vector_store %arg6[%c0_130, %c253_131], %102 {strides = array<i32>} : memref<6x324xf32, #tpu.memory_space<vmem>>, vector<6x16xf32>,
    %c1_132 = arith.constant 1 : index
    %c0_133 = arith.constant 0 : index
    %c224_134 = arith.constant 224 : index
    %104 = vector.load %arg3[%c1_132, %c0_133, %c224_134] : memref<4x6x256xf32, #tpu.memory_space<vmem>>, vector<1x6x16xf32>
    %105 = vector.shape_cast %104 : vector<1x6x16xf32> to vector<6x16xf32>
    %c0_135 = arith.constant 0 : index
    %c271_136 = arith.constant 271 : index
    %106 = vector.load %arg6[%c0_135, %c271_136] : memref<6x324xf32, #tpu.memory_space<vmem>>, vector<6x16xf32>
    tpu.vector_store %arg6[%c0_135, %c271_136], %105 {strides = array<i32>} : memref<6x324xf32, #tpu.memory_space<vmem>>, vector<6x16xf32>,
    %c1_137 = arith.constant 1 : index
    %c0_138 = arith.constant 0 : index
    %c240_139 = arith.constant 240 : index
    %107 = vector.load %arg3[%c1_137, %c0_138, %c240_139] : memref<4x6x256xf32, #tpu.memory_space<vmem>>, vector<1x6x16xf32>
    %108 = vector.shape_cast %107 : vector<1x6x16xf32> to vector<6x16xf32>
    %c0_140 = arith.constant 0 : index
    %c289_141 = arith.constant 289 : index
    %109 = vector.load %arg6[%c0_140, %c289_141] : memref<6x324xf32, #tpu.memory_space<vmem>>, vector<6x16xf32>
    tpu.vector_store %arg6[%c0_140, %c289_141], %108 {strides = array<i32>} : memref<6x324xf32, #tpu.memory_space<vmem>>, vector<6x16xf32>,
    %c0_142 = arith.constant 0 : index
    %c0_143 = arith.constant 0 : index
    %110 = vector.load %arg6[%c0_142, %c0_143] : memref<6x324xf32, #tpu.memory_space<vmem>>, vector<6x324xf32>
    %cst_144 = arith.constant dense<0.000000e+00> : vector<9x324xf32>
    %111 = tpu.matmul %0, %110, %cst_144 {dimension_numbers = #tpu.dot_dimension_numbers<[1], [0], [0], [1], [0, 0, 1, 1], [], []>} : vector<9x6xf32>, vector<6x324xf32>, vector<9x324xf32> -> vector<9x324xf32>
    %c1_145 = arith.constant 1 : index
    %c0_146 = arith.constant 0 : index
    %c0_147 = arith.constant 0 : index
    %112 = vector.load %arg4[%c1_145, %c0_146, %c0_147] : memref<4x9x324xf32, #tpu.memory_space<vmem>>, vector<1x9x324xf32>
    %113 = vector.shape_cast %112 : vector<1x9x324xf32> to vector<9x324xf32>
    %114 = vector.broadcast %1 : vector<9x1xf32> to vector<9x324xf32>
    %115 = arith.addf %113, %114 : vector<9x324xf32>
    %116 = arith.addf %115, %111 : vector<9x324xf32>
    %c1_148 = arith.constant 1 : index
    %c0_149 = arith.constant 0 : index
    %c0_150 = arith.constant 0 : index
    %117 = vector.load %arg5[%c1_148, %c0_149, %c0_150] : memref<4x9x324xf32, #tpu.memory_space<vmem>>, vector<1x9x324xf32>
    %118 = vector.shape_cast %117 : vector<1x9x324xf32> to vector<9x324xf32>
    %119 = vector.shape_cast %116 : vector<9x324xf32> to vector<1x9x324xf32>
    tpu.vector_store %arg5[%c1_148, %c0_149, %c0_150], %119 {strides = array<i32>} : memref<4x9x324xf32, #tpu.memory_space<vmem>>, vector<1x9x324xf32>,
    %c2 = arith.constant 2 : index
    %c0_151 = arith.constant 0 : index
    %c0_152 = arith.constant 0 : index
    %120 = vector.load %arg3[%c2, %c0_151, %c0_152] : memref<4x6x256xf32, #tpu.memory_space<vmem>>, vector<1x6x16xf32>
    %121 = vector.shape_cast %120 : vector<1x6x16xf32> to vector<6x16xf32>
    %c0_153 = arith.constant 0 : index
    %c19_154 = arith.constant 19 : index
    %122 = vector.load %arg6[%c0_153, %c19_154] : memref<6x324xf32, #tpu.memory_space<vmem>>, vector<6x16xf32>
    tpu.vector_store %arg6[%c0_153, %c19_154], %121 {strides = array<i32>} : memref<6x324xf32, #tpu.memory_space<vmem>>, vector<6x16xf32>,
    %c2_155 = arith.constant 2 : index
    %c0_156 = arith.constant 0 : index
    %c16_157 = arith.constant 16 : index
    %123 = vector.load %arg3[%c2_155, %c0_156, %c16_157] : memref<4x6x256xf32, #tpu.memory_space<vmem>>, vector<1x6x16xf32>
    %124 = vector.shape_cast %123 : vector<1x6x16xf32> to vector<6x16xf32>
    %c0_158 = arith.constant 0 : index
    %c37_159 = arith.constant 37 : index
    %125 = vector.load %arg6[%c0_158, %c37_159] : memref<6x324xf32, #tpu.memory_space<vmem>>, vector<6x16xf32>
    tpu.vector_store %arg6[%c0_158, %c37_159], %124 {strides = array<i32>} : memref<6x324xf32, #tpu.memory_space<vmem>>, vector<6x16xf32>,
    %c2_160 = arith.constant 2 : index
    %c0_161 = arith.constant 0 : index
    %c32_162 = arith.constant 32 : index
    %126 = vector.load %arg3[%c2_160, %c0_161, %c32_162] : memref<4x6x256xf32, #tpu.memory_space<vmem>>, vector<1x6x16xf32>
    %127 = vector.shape_cast %126 : vector<1x6x16xf32> to vector<6x16xf32>
    %c0_163 = arith.constant 0 : index
    %c55_164 = arith.constant 55 : index
    %128 = vector.load %arg6[%c0_163, %c55_164] : memref<6x324xf32, #tpu.memory_space<vmem>>, vector<6x16xf32>
    tpu.vector_store %arg6[%c0_163, %c55_164], %127 {strides = array<i32>} : memref<6x324xf32, #tpu.memory_space<vmem>>, vector<6x16xf32>,
    %c2_165 = arith.constant 2 : index
    %c0_166 = arith.constant 0 : index
    %c48_167 = arith.constant 48 : index
    %129 = vector.load %arg3[%c2_165, %c0_166, %c48_167] : memref<4x6x256xf32, #tpu.memory_space<vmem>>, vector<1x6x16xf32>
    %130 = vector.shape_cast %129 : vector<1x6x16xf32> to vector<6x16xf32>
    %c0_168 = arith.constant 0 : index
    %c73_169 = arith.constant 73 : index
    %131 = vector.load %arg6[%c0_168, %c73_169] : memref<6x324xf32, #tpu.memory_space<vmem>>, vector<6x16xf32>
    tpu.vector_store %arg6[%c0_168, %c73_169], %130 {strides = array<i32>} : memref<6x324xf32, #tpu.memory_space<vmem>>, vector<6x16xf32>,
    %c2_170 = arith.constant 2 : index
    %c0_171 = arith.constant 0 : index
    %c64_172 = arith.constant 64 : index
    %132 = vector.load %arg3[%c2_170, %c0_171, %c64_172] : memref<4x6x256xf32, #tpu.memory_space<vmem>>, vector<1x6x16xf32>
    %133 = vector.shape_cast %132 : vector<1x6x16xf32> to vector<6x16xf32>
    %c0_173 = arith.constant 0 : index
    %c91_174 = arith.constant 91 : index
    %134 = vector.load %arg6[%c0_173, %c91_174] : memref<6x324xf32, #tpu.memory_space<vmem>>, vector<6x16xf32>
    tpu.vector_store %arg6[%c0_173, %c91_174], %133 {strides = array<i32>} : memref<6x324xf32, #tpu.memory_space<vmem>>, vector<6x16xf32>,
    %c2_175 = arith.constant 2 : index
    %c0_176 = arith.constant 0 : index
    %c80_177 = arith.constant 80 : index
    %135 = vector.load %arg3[%c2_175, %c0_176, %c80_177] : memref<4x6x256xf32, #tpu.memory_space<vmem>>, vector<1x6x16xf32>
    %136 = vector.shape_cast %135 : vector<1x6x16xf32> to vector<6x16xf32>
    %c0_178 = arith.constant 0 : index
    %c109_179 = arith.constant 109 : index
    %137 = vector.load %arg6[%c0_178, %c109_179] : memref<6x324xf32, #tpu.memory_space<vmem>>, vector<6x16xf32>
    tpu.vector_store %arg6[%c0_178, %c109_179], %136 {strides = array<i32>} : memref<6x324xf32, #tpu.memory_space<vmem>>, vector<6x16xf32>,
    %c2_180 = arith.constant 2 : index
    %c0_181 = arith.constant 0 : index
    %c96_182 = arith.constant 96 : index
    %138 = vector.load %arg3[%c2_180, %c0_181, %c96_182] : memref<4x6x256xf32, #tpu.memory_space<vmem>>, vector<1x6x16xf32>
    %139 = vector.shape_cast %138 : vector<1x6x16xf32> to vector<6x16xf32>
    %c0_183 = arith.constant 0 : index
    %c127_184 = arith.constant 127 : index
    %140 = vector.load %arg6[%c0_183, %c127_184] : memref<6x324xf32, #tpu.memory_space<vmem>>, vector<6x16xf32>
    tpu.vector_store %arg6[%c0_183, %c127_184], %139 {strides = array<i32>} : memref<6x324xf32, #tpu.memory_space<vmem>>, vector<6x16xf32>,
    %c2_185 = arith.constant 2 : index
    %c0_186 = arith.constant 0 : index
    %c112_187 = arith.constant 112 : index
    %141 = vector.load %arg3[%c2_185, %c0_186, %c112_187] : memref<4x6x256xf32, #tpu.memory_space<vmem>>, vector<1x6x16xf32>
    %142 = vector.shape_cast %141 : vector<1x6x16xf32> to vector<6x16xf32>
    %c0_188 = arith.constant 0 : index
    %c145_189 = arith.constant 145 : index
    %143 = vector.load %arg6[%c0_188, %c145_189] : memref<6x324xf32, #tpu.memory_space<vmem>>, vector<6x16xf32>
    tpu.vector_store %arg6[%c0_188, %c145_189], %142 {strides = array<i32>} : memref<6x324xf32, #tpu.memory_space<vmem>>, vector<6x16xf32>,
    %c2_190 = arith.constant 2 : index
    %c0_191 = arith.constant 0 : index
    %c128_192 = arith.constant 128 : index
    %144 = vector.load %arg3[%c2_190, %c0_191, %c128_192] : memref<4x6x256xf32, #tpu.memory_space<vmem>>, vector<1x6x16xf32>
    %145 = vector.shape_cast %144 : vector<1x6x16xf32> to vector<6x16xf32>
    %c0_193 = arith.constant 0 : index
    %c163_194 = arith.constant 163 : index
    %146 = vector.load %arg6[%c0_193, %c163_194] : memref<6x324xf32, #tpu.memory_space<vmem>>, vector<6x16xf32>
    tpu.vector_store %arg6[%c0_193, %c163_194], %145 {strides = array<i32>} : memref<6x324xf32, #tpu.memory_space<vmem>>, vector<6x16xf32>,
    %c2_195 = arith.constant 2 : index
    %c0_196 = arith.constant 0 : index
    %c144_197 = arith.constant 144 : index
    %147 = vector.load %arg3[%c2_195, %c0_196, %c144_197] : memref<4x6x256xf32, #tpu.memory_space<vmem>>, vector<1x6x16xf32>
    %148 = vector.shape_cast %147 : vector<1x6x16xf32> to vector<6x16xf32>
    %c0_198 = arith.constant 0 : index
    %c181_199 = arith.constant 181 : index
    %149 = vector.load %arg6[%c0_198, %c181_199] : memref<6x324xf32, #tpu.memory_space<vmem>>, vector<6x16xf32>
    tpu.vector_store %arg6[%c0_198, %c181_199], %148 {strides = array<i32>} : memref<6x324xf32, #tpu.memory_space<vmem>>, vector<6x16xf32>,
    %c2_200 = arith.constant 2 : index
    %c0_201 = arith.constant 0 : index
    %c160_202 = arith.constant 160 : index
    %150 = vector.load %arg3[%c2_200, %c0_201, %c160_202] : memref<4x6x256xf32, #tpu.memory_space<vmem>>, vector<1x6x16xf32>
    %151 = vector.shape_cast %150 : vector<1x6x16xf32> to vector<6x16xf32>
    %c0_203 = arith.constant 0 : index
    %c199_204 = arith.constant 199 : index
    %152 = vector.load %arg6[%c0_203, %c199_204] : memref<6x324xf32, #tpu.memory_space<vmem>>, vector<6x16xf32>
    tpu.vector_store %arg6[%c0_203, %c199_204], %151 {strides = array<i32>} : memref<6x324xf32, #tpu.memory_space<vmem>>, vector<6x16xf32>,
    %c2_205 = arith.constant 2 : index
    %c0_206 = arith.constant 0 : index
    %c176_207 = arith.constant 176 : index
    %153 = vector.load %arg3[%c2_205, %c0_206, %c176_207] : memref<4x6x256xf32, #tpu.memory_space<vmem>>, vector<1x6x16xf32>
    %154 = vector.shape_cast %153 : vector<1x6x16xf32> to vector<6x16xf32>
    %c0_208 = arith.constant 0 : index
    %c217_209 = arith.constant 217 : index
    %155 = vector.load %arg6[%c0_208, %c217_209] : memref<6x324xf32, #tpu.memory_space<vmem>>, vector<6x16xf32>
    tpu.vector_store %arg6[%c0_208, %c217_209], %154 {strides = array<i32>} : memref<6x324xf32, #tpu.memory_space<vmem>>, vector<6x16xf32>,
    %c2_210 = arith.constant 2 : index
    %c0_211 = arith.constant 0 : index
    %c192_212 = arith.constant 192 : index
    %156 = vector.load %arg3[%c2_210, %c0_211, %c192_212] : memref<4x6x256xf32, #tpu.memory_space<vmem>>, vector<1x6x16xf32>
    %157 = vector.shape_cast %156 : vector<1x6x16xf32> to vector<6x16xf32>
    %c0_213 = arith.constant 0 : index
    %c235_214 = arith.constant 235 : index
    %158 = vector.load %arg6[%c0_213, %c235_214] : memref<6x324xf32, #tpu.memory_space<vmem>>, vector<6x16xf32>
    tpu.vector_store %arg6[%c0_213, %c235_214], %157 {strides = array<i32>} : memref<6x324xf32, #tpu.memory_space<vmem>>, vector<6x16xf32>,
    %c2_215 = arith.constant 2 : index
    %c0_216 = arith.constant 0 : index
    %c208_217 = arith.constant 208 : index
    %159 = vector.load %arg3[%c2_215, %c0_216, %c208_217] : memref<4x6x256xf32, #tpu.memory_space<vmem>>, vector<1x6x16xf32>
    %160 = vector.shape_cast %159 : vector<1x6x16xf32> to vector<6x16xf32>
    %c0_218 = arith.constant 0 : index
    %c253_219 = arith.constant 253 : index
    %161 = vector.load %arg6[%c0_218, %c253_219] : memref<6x324xf32, #tpu.memory_space<vmem>>, vector<6x16xf32>
    tpu.vector_store %arg6[%c0_218, %c253_219], %160 {strides = array<i32>} : memref<6x324xf32, #tpu.memory_space<vmem>>, vector<6x16xf32>,
    %c2_220 = arith.constant 2 : index
    %c0_221 = arith.constant 0 : index
    %c224_222 = arith.constant 224 : index
    %162 = vector.load %arg3[%c2_220, %c0_221, %c224_222] : memref<4x6x256xf32, #tpu.memory_space<vmem>>, vector<1x6x16xf32>
    %163 = vector.shape_cast %162 : vector<1x6x16xf32> to vector<6x16xf32>
    %c0_223 = arith.constant 0 : index
    %c271_224 = arith.constant 271 : index
    %164 = vector.load %arg6[%c0_223, %c271_224] : memref<6x324xf32, #tpu.memory_space<vmem>>, vector<6x16xf32>
    tpu.vector_store %arg6[%c0_223, %c271_224], %163 {strides = array<i32>} : memref<6x324xf32, #tpu.memory_space<vmem>>, vector<6x16xf32>,
    %c2_225 = arith.constant 2 : index
    %c0_226 = arith.constant 0 : index
    %c240_227 = arith.constant 240 : index
    %165 = vector.load %arg3[%c2_225, %c0_226, %c240_227] : memref<4x6x256xf32, #tpu.memory_space<vmem>>, vector<1x6x16xf32>
    %166 = vector.shape_cast %165 : vector<1x6x16xf32> to vector<6x16xf32>
    %c0_228 = arith.constant 0 : index
    %c289_229 = arith.constant 289 : index
    %167 = vector.load %arg6[%c0_228, %c289_229] : memref<6x324xf32, #tpu.memory_space<vmem>>, vector<6x16xf32>
    tpu.vector_store %arg6[%c0_228, %c289_229], %166 {strides = array<i32>} : memref<6x324xf32, #tpu.memory_space<vmem>>, vector<6x16xf32>,
    %c0_230 = arith.constant 0 : index
    %c0_231 = arith.constant 0 : index
    %168 = vector.load %arg6[%c0_230, %c0_231] : memref<6x324xf32, #tpu.memory_space<vmem>>, vector<6x324xf32>
    %cst_232 = arith.constant dense<0.000000e+00> : vector<9x324xf32>
    %169 = tpu.matmul %0, %168, %cst_232 {dimension_numbers = #tpu.dot_dimension_numbers<[1], [0], [0], [1], [0, 0, 1, 1], [], []>} : vector<9x6xf32>, vector<6x324xf32>, vector<9x324xf32> -> vector<9x324xf32>
    %c2_233 = arith.constant 2 : index
    %c0_234 = arith.constant 0 : index
    %c0_235 = arith.constant 0 : index
    %170 = vector.load %arg4[%c2_233, %c0_234, %c0_235] : memref<4x9x324xf32, #tpu.memory_space<vmem>>, vector<1x9x324xf32>
    %171 = vector.shape_cast %170 : vector<1x9x324xf32> to vector<9x324xf32>
    %172 = vector.broadcast %1 : vector<9x1xf32> to vector<9x324xf32>
    %173 = arith.addf %171, %172 : vector<9x324xf32>
    %174 = arith.addf %173, %169 : vector<9x324xf32>
    %c2_236 = arith.constant 2 : index
    %c0_237 = arith.constant 0 : index
    %c0_238 = arith.constant 0 : index
    %175 = vector.load %arg5[%c2_236, %c0_237, %c0_238] : memref<4x9x324xf32, #tpu.memory_space<vmem>>, vector<1x9x324xf32>
    %176 = vector.shape_cast %175 : vector<1x9x324xf32> to vector<9x324xf32>
    %177 = vector.shape_cast %174 : vector<9x324xf32> to vector<1x9x324xf32>
    tpu.vector_store %arg5[%c2_236, %c0_237, %c0_238], %177 {strides = array<i32>} : memref<4x9x324xf32, #tpu.memory_space<vmem>>, vector<1x9x324xf32>,
    %c3 = arith.constant 3 : index
    %c0_239 = arith.constant 0 : index
    %c0_240 = arith.constant 0 : index
    %178 = vector.load %arg3[%c3, %c0_239, %c0_240] : memref<4x6x256xf32, #tpu.memory_space<vmem>>, vector<1x6x16xf32>
    %179 = vector.shape_cast %178 : vector<1x6x16xf32> to vector<6x16xf32>
    %c0_241 = arith.constant 0 : index
    %c19_242 = arith.constant 19 : index
    %180 = vector.load %arg6[%c0_241, %c19_242] : memref<6x324xf32, #tpu.memory_space<vmem>>, vector<6x16xf32>
    tpu.vector_store %arg6[%c0_241, %c19_242], %179 {strides = array<i32>} : memref<6x324xf32, #tpu.memory_space<vmem>>, vector<6x16xf32>,
    %c3_243 = arith.constant 3 : index
    %c0_244 = arith.constant 0 : index
    %c16_245 = arith.constant 16 : index
    %181 = vector.load %arg3[%c3_243, %c0_244, %c16_245] : memref<4x6x256xf32, #tpu.memory_space<vmem>>, vector<1x6x16xf32>
    %182 = vector.shape_cast %181 : vector<1x6x16xf32> to vector<6x16xf32>
    %c0_246 = arith.constant 0 : index
    %c37_247 = arith.constant 37 : index
    %183 = vector.load %arg6[%c0_246, %c37_247] : memref<6x324xf32, #tpu.memory_space<vmem>>, vector<6x16xf32>
    tpu.vector_store %arg6[%c0_246, %c37_247], %182 {strides = array<i32>} : memref<6x324xf32, #tpu.memory_space<vmem>>, vector<6x16xf32>,
    %c3_248 = arith.constant 3 : index
    %c0_249 = arith.constant 0 : index
    %c32_250 = arith.constant 32 : index
    %184 = vector.load %arg3[%c3_248, %c0_249, %c32_250] : memref<4x6x256xf32, #tpu.memory_space<vmem>>, vector<1x6x16xf32>
    %185 = vector.shape_cast %184 : vector<1x6x16xf32> to vector<6x16xf32>
    %c0_251 = arith.constant 0 : index
    %c55_252 = arith.constant 55 : index
    %186 = vector.load %arg6[%c0_251, %c55_252] : memref<6x324xf32, #tpu.memory_space<vmem>>, vector<6x16xf32>
    tpu.vector_store %arg6[%c0_251, %c55_252], %185 {strides = array<i32>} : memref<6x324xf32, #tpu.memory_space<vmem>>, vector<6x16xf32>,
    %c3_253 = arith.constant 3 : index
    %c0_254 = arith.constant 0 : index
    %c48_255 = arith.constant 48 : index
    %187 = vector.load %arg3[%c3_253, %c0_254, %c48_255] : memref<4x6x256xf32, #tpu.memory_space<vmem>>, vector<1x6x16xf32>
    %188 = vector.shape_cast %187 : vector<1x6x16xf32> to vector<6x16xf32>
    %c0_256 = arith.constant 0 : index
    %c73_257 = arith.constant 73 : index
    %189 = vector.load %arg6[%c0_256, %c73_257] : memref<6x324xf32, #tpu.memory_space<vmem>>, vector<6x16xf32>
    tpu.vector_store %arg6[%c0_256, %c73_257], %188 {strides = array<i32>} : memref<6x324xf32, #tpu.memory_space<vmem>>, vector<6x16xf32>,
    %c3_258 = arith.constant 3 : index
    %c0_259 = arith.constant 0 : index
    %c64_260 = arith.constant 64 : index
    %190 = vector.load %arg3[%c3_258, %c0_259, %c64_260] : memref<4x6x256xf32, #tpu.memory_space<vmem>>, vector<1x6x16xf32>
    %191 = vector.shape_cast %190 : vector<1x6x16xf32> to vector<6x16xf32>
    %c0_261 = arith.constant 0 : index
    %c91_262 = arith.constant 91 : index
    %192 = vector.load %arg6[%c0_261, %c91_262] : memref<6x324xf32, #tpu.memory_space<vmem>>, vector<6x16xf32>
    tpu.vector_store %arg6[%c0_261, %c91_262], %191 {strides = array<i32>} : memref<6x324xf32, #tpu.memory_space<vmem>>, vector<6x16xf32>,
    %c3_263 = arith.constant 3 : index
    %c0_264 = arith.constant 0 : index
    %c80_265 = arith.constant 80 : index
    %193 = vector.load %arg3[%c3_263, %c0_264, %c80_265] : memref<4x6x256xf32, #tpu.memory_space<vmem>>, vector<1x6x16xf32>
    %194 = vector.shape_cast %193 : vector<1x6x16xf32> to vector<6x16xf32>
    %c0_266 = arith.constant 0 : index
    %c109_267 = arith.constant 109 : index
    %195 = vector.load %arg6[%c0_266, %c109_267] : memref<6x324xf32, #tpu.memory_space<vmem>>, vector<6x16xf32>
    tpu.vector_store %arg6[%c0_266, %c109_267], %194 {strides = array<i32>} : memref<6x324xf32, #tpu.memory_space<vmem>>, vector<6x16xf32>,
    %c3_268 = arith.constant 3 : index
    %c0_269 = arith.constant 0 : index
    %c96_270 = arith.constant 96 : index
    %196 = vector.load %arg3[%c3_268, %c0_269, %c96_270] : memref<4x6x256xf32, #tpu.memory_space<vmem>>, vector<1x6x16xf32>
    %197 = vector.shape_cast %196 : vector<1x6x16xf32> to vector<6x16xf32>
    %c0_271 = arith.constant 0 : index
    %c127_272 = arith.constant 127 : index
    %198 = vector.load %arg6[%c0_271, %c127_272] : memref<6x324xf32, #tpu.memory_space<vmem>>, vector<6x16xf32>
    tpu.vector_store %arg6[%c0_271, %c127_272], %197 {strides = array<i32>} : memref<6x324xf32, #tpu.memory_space<vmem>>, vector<6x16xf32>,
    %c3_273 = arith.constant 3 : index
    %c0_274 = arith.constant 0 : index
    %c112_275 = arith.constant 112 : index
    %199 = vector.load %arg3[%c3_273, %c0_274, %c112_275] : memref<4x6x256xf32, #tpu.memory_space<vmem>>, vector<1x6x16xf32>
    %200 = vector.shape_cast %199 : vector<1x6x16xf32> to vector<6x16xf32>
    %c0_276 = arith.constant 0 : index
    %c145_277 = arith.constant 145 : index
    %201 = vector.load %arg6[%c0_276, %c145_277] : memref<6x324xf32, #tpu.memory_space<vmem>>, vector<6x16xf32>
    tpu.vector_store %arg6[%c0_276, %c145_277], %200 {strides = array<i32>} : memref<6x324xf32, #tpu.memory_space<vmem>>, vector<6x16xf32>,
    %c3_278 = arith.constant 3 : index
    %c0_279 = arith.constant 0 : index
    %c128_280 = arith.constant 128 : index
    %202 = vector.load %arg3[%c3_278, %c0_279, %c128_280] : memref<4x6x256xf32, #tpu.memory_space<vmem>>, vector<1x6x16xf32>
    %203 = vector.shape_cast %202 : vector<1x6x16xf32> to vector<6x16xf32>
    %c0_281 = arith.constant 0 : index
    %c163_282 = arith.constant 163 : index
    %204 = vector.load %arg6[%c0_281, %c163_282] : memref<6x324xf32, #tpu.memory_space<vmem>>, vector<6x16xf32>
    tpu.vector_store %arg6[%c0_281, %c163_282], %203 {strides = array<i32>} : memref<6x324xf32, #tpu.memory_space<vmem>>, vector<6x16xf32>,
    %c3_283 = arith.constant 3 : index
    %c0_284 = arith.constant 0 : index
    %c144_285 = arith.constant 144 : index
    %205 = vector.load %arg3[%c3_283, %c0_284, %c144_285] : memref<4x6x256xf32, #tpu.memory_space<vmem>>, vector<1x6x16xf32>
    %206 = vector.shape_cast %205 : vector<1x6x16xf32> to vector<6x16xf32>
    %c0_286 = arith.constant 0 : index
    %c181_287 = arith.constant 181 : index
    %207 = vector.load %arg6[%c0_286, %c181_287] : memref<6x324xf32, #tpu.memory_space<vmem>>, vector<6x16xf32>
    tpu.vector_store %arg6[%c0_286, %c181_287], %206 {strides = array<i32>} : memref<6x324xf32, #tpu.memory_space<vmem>>, vector<6x16xf32>,
    %c3_288 = arith.constant 3 : index
    %c0_289 = arith.constant 0 : index
    %c160_290 = arith.constant 160 : index
    %208 = vector.load %arg3[%c3_288, %c0_289, %c160_290] : memref<4x6x256xf32, #tpu.memory_space<vmem>>, vector<1x6x16xf32>
    %209 = vector.shape_cast %208 : vector<1x6x16xf32> to vector<6x16xf32>
    %c0_291 = arith.constant 0 : index
    %c199_292 = arith.constant 199 : index
    %210 = vector.load %arg6[%c0_291, %c199_292] : memref<6x324xf32, #tpu.memory_space<vmem>>, vector<6x16xf32>
    tpu.vector_store %arg6[%c0_291, %c199_292], %209 {strides = array<i32>} : memref<6x324xf32, #tpu.memory_space<vmem>>, vector<6x16xf32>,
    %c3_293 = arith.constant 3 : index
    %c0_294 = arith.constant 0 : index
    %c176_295 = arith.constant 176 : index
    %211 = vector.load %arg3[%c3_293, %c0_294, %c176_295] : memref<4x6x256xf32, #tpu.memory_space<vmem>>, vector<1x6x16xf32>
    %212 = vector.shape_cast %211 : vector<1x6x16xf32> to vector<6x16xf32>
    %c0_296 = arith.constant 0 : index
    %c217_297 = arith.constant 217 : index
    %213 = vector.load %arg6[%c0_296, %c217_297] : memref<6x324xf32, #tpu.memory_space<vmem>>, vector<6x16xf32>
    tpu.vector_store %arg6[%c0_296, %c217_297], %212 {strides = array<i32>} : memref<6x324xf32, #tpu.memory_space<vmem>>, vector<6x16xf32>,
    %c3_298 = arith.constant 3 : index
    %c0_299 = arith.constant 0 : index
    %c192_300 = arith.constant 192 : index
    %214 = vector.load %arg3[%c3_298, %c0_299, %c192_300] : memref<4x6x256xf32, #tpu.memory_space<vmem>>, vector<1x6x16xf32>
    %215 = vector.shape_cast %214 : vector<1x6x16xf32> to vector<6x16xf32>
    %c0_301 = arith.constant 0 : index
    %c235_302 = arith.constant 235 : index
    %216 = vector.load %arg6[%c0_301, %c235_302] : memref<6x324xf32, #tpu.memory_space<vmem>>, vector<6x16xf32>
    tpu.vector_store %arg6[%c0_301, %c235_302], %215 {strides = array<i32>} : memref<6x324xf32, #tpu.memory_space<vmem>>, vector<6x16xf32>,
    %c3_303 = arith.constant 3 : index
    %c0_304 = arith.constant 0 : index
    %c208_305 = arith.constant 208 : index
    %217 = vector.load %arg3[%c3_303, %c0_304, %c208_305] : memref<4x6x256xf32, #tpu.memory_space<vmem>>, vector<1x6x16xf32>
    %218 = vector.shape_cast %217 : vector<1x6x16xf32> to vector<6x16xf32>
    %c0_306 = arith.constant 0 : index
    %c253_307 = arith.constant 253 : index
    %219 = vector.load %arg6[%c0_306, %c253_307] : memref<6x324xf32, #tpu.memory_space<vmem>>, vector<6x16xf32>
    tpu.vector_store %arg6[%c0_306, %c253_307], %218 {strides = array<i32>} : memref<6x324xf32, #tpu.memory_space<vmem>>, vector<6x16xf32>,
    %c3_308 = arith.constant 3 : index
    %c0_309 = arith.constant 0 : index
    %c224_310 = arith.constant 224 : index
    %220 = vector.load %arg3[%c3_308, %c0_309, %c224_310] : memref<4x6x256xf32, #tpu.memory_space<vmem>>, vector<1x6x16xf32>
    %221 = vector.shape_cast %220 : vector<1x6x16xf32> to vector<6x16xf32>
    %c0_311 = arith.constant 0 : index
    %c271_312 = arith.constant 271 : index
    %222 = vector.load %arg6[%c0_311, %c271_312] : memref<6x324xf32, #tpu.memory_space<vmem>>, vector<6x16xf32>
    tpu.vector_store %arg6[%c0_311, %c271_312], %221 {strides = array<i32>} : memref<6x324xf32, #tpu.memory_space<vmem>>, vector<6x16xf32>,
    %c3_313 = arith.constant 3 : index
    %c0_314 = arith.constant 0 : index
    %c240_315 = arith.constant 240 : index
    %223 = vector.load %arg3[%c3_313, %c0_314, %c240_315] : memref<4x6x256xf32, #tpu.memory_space<vmem>>, vector<1x6x16xf32>
    %224 = vector.shape_cast %223 : vector<1x6x16xf32> to vector<6x16xf32>
    %c0_316 = arith.constant 0 : index
    %c289_317 = arith.constant 289 : index
    %225 = vector.load %arg6[%c0_316, %c289_317] : memref<6x324xf32, #tpu.memory_space<vmem>>, vector<6x16xf32>
    tpu.vector_store %arg6[%c0_316, %c289_317], %224 {strides = array<i32>} : memref<6x324xf32, #tpu.memory_space<vmem>>, vector<6x16xf32>,
    %c0_318 = arith.constant 0 : index
    %c0_319 = arith.constant 0 : index
    %226 = vector.load %arg6[%c0_318, %c0_319] : memref<6x324xf32, #tpu.memory_space<vmem>>, vector<6x324xf32>
    %cst_320 = arith.constant dense<0.000000e+00> : vector<9x324xf32>
    %227 = tpu.matmul %0, %226, %cst_320 {dimension_numbers = #tpu.dot_dimension_numbers<[1], [0], [0], [1], [0, 0, 1, 1], [], []>} : vector<9x6xf32>, vector<6x324xf32>, vector<9x324xf32> -> vector<9x324xf32>
    %c3_321 = arith.constant 3 : index
    %c0_322 = arith.constant 0 : index
    %c0_323 = arith.constant 0 : index
    %228 = vector.load %arg4[%c3_321, %c0_322, %c0_323] : memref<4x9x324xf32, #tpu.memory_space<vmem>>, vector<1x9x324xf32>
    %229 = vector.shape_cast %228 : vector<1x9x324xf32> to vector<9x324xf32>
    %230 = vector.broadcast %1 : vector<9x1xf32> to vector<9x324xf32>
    %231 = arith.addf %229, %230 : vector<9x324xf32>
    %232 = arith.addf %231, %227 : vector<9x324xf32>
    %c3_324 = arith.constant 3 : index
    %c0_325 = arith.constant 0 : index
    %c0_326 = arith.constant 0 : index
    %233 = vector.load %arg5[%c3_324, %c0_325, %c0_326] : memref<4x9x324xf32, #tpu.memory_space<vmem>>, vector<1x9x324xf32>
    %234 = vector.shape_cast %233 : vector<1x9x324xf32> to vector<9x324xf32>
    %235 = vector.shape_cast %232 : vector<9x324xf32> to vector<1x9x324xf32>
    tpu.vector_store %arg5[%c3_324, %c0_325, %c0_326], %235 {strides = array<i32>} : memref<4x9x324xf32, #tpu.memory_space<vmem>>, vector<1x9x324xf32>,
    return
  }
  func.func @transform_0(%arg0: i32) -> (i32, i32) {
    %c0_i32 = arith.constant 0 : i32
    %c0_i32_0 = arith.constant 0 : i32
    %c0_i32_1 = arith.constant 0 : i32
    return %c0_i32, %c0_i32_0 : i32, i32
  }
  func.func @transform_1(%arg0: i32) -> (i32, i32) {
    %c0_i32 = arith.constant 0 : i32
    %c0_i32_0 = arith.constant 0 : i32
    %c0_i32_1 = arith.constant 0 : i32
    return %c0_i32, %c0_i32_0 : i32, i32
  }
  func.func @transform_2(%arg0: i32) -> (i32, i32, i32) {
    %c0_i32 = arith.constant 0 : i32
    %c0_i32_0 = arith.constant 0 : i32
    %c0_i32_1 = arith.constant 0 : i32
    return %arg0, %c0_i32, %c0_i32_0 : i32, i32, i32
  }
  func.func @transform_3(%arg0: i32) -> (i32, i32, i32) {
    %c0_i32 = arith.constant 0 : i32
    %c0_i32_0 = arith.constant 0 : i32
    %c0_i32_1 = arith.constant 0 : i32
    return %arg0, %c0_i32, %c0_i32_0 : i32, i32, i32
  }
  func.func @transform_4(%arg0: i32) -> (i32, i32, i32) {
    %c0_i32 = arith.constant 0 : i32
    %c0_i32_0 = arith.constant 0 : i32
    %c0_i32_1 = arith.constant 0 : i32
    return %arg0, %c0_i32, %c0_i32_0 : i32, i32, i32
  }
}

</mosaic_0001>

<llo_original>
// kernel: tpu_custom_call.1
$region0: #{tpu_custom_call.1}
  #allocation0 [shape = 'u32[]', space=smem, size = 0x4, offset = 0x4, fixed_abs, tag = 'smem constant byte address 0x4 - core index']
  #allocation1 [shape = 'u32[144,128]{1,0:T(1,128)}', space=vmem, size = 0x12000, scoped, tag = 'internal scratch']
  #allocation2 [shape = 'f32[6,324]{1,0:T(8,128)}', space=vmem, size = 0x3000, scoped, tag = 'scratch operand']
  %s0 = inlined_call_operand.vmem [shape: f32[9,6], index: 0, kind: input, shape index: {}]
  %s1 = inlined_call_operand.vmem [shape: f32[9,1], index: 1, kind: input, shape index: {}]
  %s2 = inlined_call_operand.vmem [shape: f32[4,6,256], index: 2, kind: input, shape index: {}]
  %s3 = inlined_call_operand.vmem [shape: f32[4,9,324], index: 3, kind: input, shape index: {}, may-alias: {3,4}]
  %s4 = inlined_call_operand.vmem [shape: f32[4,9,324], index: 4, kind: output, shape index: {}, may-alias: {3,4}]
  %s5 = sld [smem:[#allocation0]]
  $region26: #{tpu_custom_call.1} parent=0
    _
  %s7 = ssub.s32 1, %s5
  %s8 = scalar_select 0, %s7, %s5
  // Predicated region
  $region2: #{tpu_custom_call.1} parent=0 // pred_check
    _
  $region3: #{tpu_custom_call.1} parent=0 // pred_check_branch
    %10 = sbr.rel (0) target = $region5
  $region4: #{tpu_custom_call.1} parent=0 // pred_region
    _
  $region5: #{tpu_custom_call.1} parent=0 // pred_fallthru
    _
  // Predicated region
  $region6: #{tpu_custom_call.1} parent=0 // pred_check
    _
  $region7: #{tpu_custom_call.1} parent=0 // pred_check_branch
    %12 = sbr.rel (0) target = $region9
  $region8: #{tpu_custom_call.1} parent=0 // pred_region
    _
  $region9: #{tpu_custom_call.1} parent=0 // pred_fallthru
    _
  // Predicated region
  $region10: #{tpu_custom_call.1} parent=0 // pred_check
    _
  $region11: #{tpu_custom_call.1} parent=0 // pred_check_branch
    %14 = sbr.rel (0) target = $region13
  $region12: #{tpu_custom_call.1} parent=0 // pred_region
    _
  $region13: #{tpu_custom_call.1} parent=0 // pred_fallthru
    _
  // Predicated region
  $region14: #{tpu_custom_call.1} parent=0 // pred_check
    _
  $region15: #{tpu_custom_call.1} parent=0 // pred_check_branch
    %16 = sbr.rel (0) target = $region17
  $region16: #{tpu_custom_call.1} parent=0 // pred_region
    _
  $region17: #{tpu_custom_call.1} parent=0 // pred_fallthru
    _
  %v17 = vld [vmem:[%s0] sm:$0xff]
  %v18 = vld [vmem:[%s0 + $0x8] sm:$0x1]
  %v19 = vld [vmem:[%s1] sm:$0xff]
  %v20 = vld [vmem:[%s1 + $0x8] sm:$0x1]
  %21 = vst [vmem:[#allocation2] sm:$0x3f] 0.0
  %22 = vst [vmem:[#allocation2 + $0x8] sm:$0x3f] 0.0
  %vm23 = vcmask 553984
  %24 = vst.msk [vmem:[#allocation2 + $0x10] sm:$0x3f] %vm23, 0.0
  %v25 = vld [vmem:[%s2] sm:$0x3f]
  %27 = vrot.lane.b32.xlu0 %v25, 19
  %v28 = vpop.permute.xlu0 %27
  %vm30 = vcmask 283800
  %31 = vst.msk [vmem:[#allocation2] sm:$0x3f] %vm30, %v28
  %v32 = vld [vmem:[%s2] sm:$0x3f]
  %34 = vrot.lane.b32.xlu0 %v32, 21
  %v35 = vpop.permute.xlu0 %34
  %vm37 = vcmask 431400
  %38 = vst.msk [vmem:[#allocation2] sm:$0x3f] %vm37, %v35
  %v39 = vld [vmem:[%s2] sm:$0x3f]
  %41 = vrot.lane.b32.xlu0 %v39, 23
  %v42 = vpop.permute.xlu0 %41
  %vm44 = vcmask 579000
  %45 = vst.msk [vmem:[#allocation2] sm:$0x3f] %vm44, %v42
  %v46 = vld [vmem:[%s2] sm:$0x3f]
  %48 = vrot.lane.b32.xlu0 %v46, 25
  %v49 = vpop.permute.xlu0 %48
  %vm51 = vcmask 726600
  %52 = vst.msk [vmem:[#allocation2] sm:$0x3f] %vm51, %v49
  %v53 = vld [vmem:[%s2] sm:$0x3f]
  %55 = vrot.lane.b32.xlu0 %v53, 27
  %v56 = vpop.permute.xlu0 %55
  %vm58 = vcmask 874200
  %59 = vst.msk [vmem:[#allocation2] sm:$0x3f] %vm58, %v56
  %v60 = vld [vmem:[%s2] sm:$0x3f]
  %62 = vrot.lane.b32.xlu0 %v60, 29
  %v63 = vpop.permute.xlu0 %62
  %vm65 = vcmask 1021800
  %66 = vst.msk [vmem:[#allocation2] sm:$0x3f] %vm65, %v63
  %v67 = vld [vmem:[%s2] sm:$0x3f]
  %69 = vrot.lane.b32.xlu0 %v67, 31
  %v70 = vpop.permute.xlu0 %69
  %vm72 = vcmask 1046520
  %73 = vst.msk [vmem:[#allocation2] sm:$0x3f] %vm72, %v70
  %vm74 = vcmask 119808
  %75 = vst.msk [vmem:[#allocation2 + $0x8] sm:$0x3f] %vm74, %v70
  %v76 = vld [vmem:[%s2] sm:$0x3f]
  %78 = vrot.lane.b32.xlu0 %v76, 33
  %v79 = vpop.permute.xlu0 %78
  %vm81 = vcmask 267400
  %82 = vst.msk [vmem:[#allocation2 + $0x8] sm:$0x3f] %vm81, %v79
  %v83 = vld [vmem:[%s2 + $0x8] sm:$0x3f]
  %85 = vrot.lane.b32.xlu0 %v83, 35
  %v86 = vpop.permute.xlu0 %85
  %vm88 = vcmask 415000
  %89 = vst.msk [vmem:[#allocation2 + $0x8] sm:$0x3f] %vm88, %v86
  %v90 = vld [vmem:[%s2 + $0x8] sm:$0x3f]
  %92 = vrot.lane.b32.xlu0 %v90, 37
  %v93 = vpop.permute.xlu0 %92
  %vm95 = vcmask 562600
  %96 = vst.msk [vmem:[#allocation2 + $0x8] sm:$0x3f] %vm95, %v93
  %v97 = vld [vmem:[%s2 + $0x8] sm:$0x3f]
  %99 = vrot.lane.b32.xlu0 %v97, 39
  %v100 = vpop.permute.xlu0 %99
  %vm102 = vcmask 710200
  %103 = vst.msk [vmem:[#allocation2 + $0x8] sm:$0x3f] %vm102, %v100
  %v104 = vld [vmem:[%s2 + $0x8] sm:$0x3f]
  %106 = vrot.lane.b32.xlu0 %v104, 41
  %v107 = vpop.permute.xlu0 %106
  %vm109 = vcmask 857800
  %110 = vst.msk [vmem:[#allocation2 + $0x8] sm:$0x3f] %vm109, %v107
  %v111 = vld [vmem:[%s2 + $0x8] sm:$0x3f]
  %113 = vrot.lane.b32.xlu0 %v111, 43
  %v114 = vpop.permute.xlu0 %113
  %vm116 = vcmask 1005400
  %117 = vst.msk [vmem:[#allocation2 + $0x8] sm:$0x3f] %vm116, %v114
  %v118 = vld [vmem:[%s2 + $0x8] sm:$0x3f]
  %120 = vrot.lane.b32.xlu0 %v118, 45
  %v121 = vpop.permute.xlu0 %120
  %vm123 = vcmask 1046504
  %124 = vst.msk [vmem:[#allocation2 + $0x8] sm:$0x3f] %vm123, %v121
  %vm125 = vcmask 103424
  %126 = vst.msk [vmem:[#allocation2 + $0x10] sm:$0x3f] %vm125, %v121
  %v127 = vld [vmem:[%s2 + $0x8] sm:$0x3f]
  %129 = vrot.lane.b32.xlu0 %v127, 47
  %v130 = vpop.permute.xlu0 %129
  %vm132 = vcmask 251000
  %133 = vst.msk [vmem:[#allocation2 + $0x10] sm:$0x3f] %vm132, %v130
  %v134 = vld [vmem:[%s2 + $0x8] sm:$0x3f]
  %136 = vrot.lane.b32.xlu0 %v134, 49
  %v137 = vpop.permute.xlu0 %136
  %vm139 = vcmask 398600
  %140 = vst.msk [vmem:[#allocation2 + $0x10] sm:$0x3f] %vm139, %v137
  %v141 = vld [vmem:[#allocation2] sm:$0x3f]
  %v142 = vld [vmem:[#allocation2 + $0x8] sm:$0x3f]
  %v143 = vld [vmem:[#allocation2 + $0x10] sm:$0x3f]
  %vm144 = vcmask 48128
  %v146 = vsel %vm144, %v17, 0
  %v149 = vsel %vm144, %v18, 0
  %vm151 = vcmask 1045504
  %v153 = vsel %vm151, %v141, 0
  %v156 = vsel %vm151, %v142, 0
  %v159 = vsel %vm151, %v143, 0
  %161 = vmatprep.subr.mxu0 %v156
  %162 = vmatpush1.msra.mxu0 %v153
  %163 = vmatprep.subr.mxu0 0.0
  %164 = vmatpush1.msra.mxu0 0.0
  %165 = vmatprep.subr.mxu0 0.0
  %166 = vmatpush1.msra.mxu0 0.0
  %167 = vmatprep.subr.mxu0 0.0
  %168 = vmatpush1.msra.mxu0 0.0
  %169 = vmatprep.subr.mxu0 0.0
  %170 = vmatpush1.msra.mxu0 0.0
  %171 = vmatprep.subr.mxu0 0.0
  %172 = vmatpush1.msra.mxu0 0.0
  %173 = vmatprep.subr.mxu0 0.0
  %174 = vmatpush1.msra.mxu0 0.0
  %175 = vmatprep.subr.mxu0 0.0
  %176 = vmatpush1.msra.mxu0 0.0
  %177 = vmatprep.subr.mxu0 0.0
  %178 = vmatpush1.msra.mxu0 0.0
  %179 = vmatprep.subr.mxu0 0.0
  %180 = vmatpush1.msra.mxu0 0.0
  %181 = vmatprep.subr.mxu0 0.0
  %182 = vmatpush1.msra.mxu0 0.0
  %183 = vmatprep.subr.mxu0 0.0
  %184 = vmatpush1.msra.mxu0 0.0
  %185 = vmatprep.subr.mxu0 0.0
  %186 = vmatpush1.msra.mxu0 0.0
  %187 = vmatprep.subr.mxu0 0.0
  %188 = vmatpush1.msra.mxu0 0.0
  %189 = vmatprep.subr.mxu0 0.0
  %190 = vmatpush1.msra.mxu0 0.0
  %191 = vmatprep.subr.mxu0 0.0
  %192 = vmatpush1.msra.mxu0 0.0
  %193 = vmatprep.subr.mxu0 0.0
  %194 = vmatpush1.msra.mxu0 0.0
  %195 = vmatprep.subr.mxu0 0.0
  %196 = vmatpush1.msra.mxu0 0.0
  %197 = vmatprep.subr.mxu0 0.0
  %198 = vmatpush1.msra.mxu0 0.0
  %199 = vmatprep.subr.mxu0 0.0
  %200 = vmatpush1.msra.mxu0 0.0
  %201 = vmatprep.subr.mxu0 0.0
  %202 = vmatpush1.msra.mxu0 0.0
  %203 = vmatprep.subr.mxu0 0.0
  %204 = vmatpush1.msra.mxu0 0.0
  %205 = vmatprep.subr.mxu0 0.0
  %206 = vmatpush1.msra.mxu0 0.0
  %207 = vmatprep.subr.mxu0 0.0
  %208 = vmatpush1.msra.mxu0 0.0
  %209 = vmatprep.subr.mxu0 0.0
  %210 = vmatpush1.msra.mxu0 0.0
  %211 = vmatprep.subr.mxu0 0.0
  %212 = vmatpush1.msra.mxu0 0.0
  %213 = vmatprep.subr.mxu0 0.0
  %214 = vmatpush1.msra.mxu0 0.0
  %215 = vmatprep.subr.mxu0 0.0
  %216 = vmatpush1.msra.mxu0 0.0
  %217 = vmatprep.subr.mxu0 0.0
  %218 = vmatpush1.msra.mxu0 0.0
  %219 = vmatprep.subr.mxu0 0.0
  %220 = vmatpush1.msra.mxu0 0.0
  %221 = vmatprep.subr.mxu0 0.0
  %222 = vmatpush1.msra.mxu0 0.0
  %223 = vmatprep.subr.mxu0 0.0
  %224 = vmatpush1.msra.mxu0 0.0
  %225 = vmatprep.mubr.f32.mxu0 0.0
  %226 = vmatmul.mubr.f32.gmra.mrb[0].mxu0 %v146
  %v227 = vpop.f32.mrb[0].mxu0
  %v228 = vadd.f32 0.0, %v227
  %v229 = vpop.f32.mrb[0].mxu0
  %v230 = vadd.f32 0.0, %v229
  %231 = vmatprep.mubr.f32.mxu0 0.0
  %232 = vmatmul.mubr.f32.gmra.mrb[0].mxu0 %v149
  %v233 = vpop.f32.mrb[0].mxu0
  %v234 = vadd.f32 0.0, %v233
  %v235 = vpop.f32.mrb[0].mxu0
  %v236 = vadd.f32 0.0, %v235
  %237 = vdwg.mxu0
  %238 = vmatprep.subr.mxu0 0.0
  %239 = vmatpush1.msra.mxu0 %v159
  %240 = vmatprep.subr.mxu0 0.0
  %241 = vmatpush1.msra.mxu0 0.0
  %242 = vmatprep.subr.mxu0 0.0
  %243 = vmatpush1.msra.mxu0 0.0
  %244 = vmatprep.subr.mxu0 0.0
  %245 = vmatpush1.msra.mxu0 0.0
  %246 = vmatprep.subr.mxu0 0.0
  %247 = vmatpush1.msra.mxu0 0.0
  %248 = vmatprep.subr.mxu0 0.0
  %249 = vmatpush1.msra.mxu0 0.0
  %250 = vmatprep.subr.mxu0 0.0
  %251 = vmatpush1.msra.mxu0 0.0
  %252 = vmatprep.subr.mxu0 0.0
  %253 = vmatpush1.msra.mxu0 0.0
  %254 = vmatprep.subr.mxu0 0.0
  %255 = vmatpush1.msra.mxu0 0.0
  %256 = vmatprep.subr.mxu0 0.0
  %257 = vmatpush1.msra.mxu0 0.0
  %258 = vmatprep.subr.mxu0 0.0
  %259 = vmatpush1.msra.mxu0 0.0
  %260 = vmatprep.subr.mxu0 0.0
  %261 = vmatpush1.msra.mxu0 0.0
  %262 = vmatprep.subr.mxu0 0.0
  %263 = vmatpush1.msra.mxu0 0.0
  %264 = vmatprep.subr.mxu0 0.0
  %265 = vmatpush1.msra.mxu0 0.0
  %266 = vmatprep.subr.mxu0 0.0
  %267 = vmatpush1.msra.mxu0 0.0
  %268 = vmatprep.subr.mxu0 0.0
  %269 = vmatpush1.msra.mxu0 0.0
  %270 = vmatprep.subr.mxu0 0.0
  %271 = vmatpush1.msra.mxu0 0.0
  %272 = vmatprep.subr.mxu0 0.0
  %273 = vmatpush1.msra.mxu0 0.0
  %274 = vmatprep.subr.mxu0 0.0
  %275 = vmatpush1.msra.mxu0 0.0
  %276 = vmatprep.subr.mxu0 0.0
  %277 = vmatpush1.msra.mxu0 0.0
  %278 = vmatprep.subr.mxu0 0.0
  %279 = vmatpush1.msra.mxu0 0.0
  %280 = vmatprep.subr.mxu0 0.0
  %281 = vmatpush1.msra.mxu0 0.0
  %282 = vmatprep.subr.mxu0 0.0
  %283 = vmatpush1.msra.mxu0 0.0
  %284 = vmatprep.subr.mxu0 0.0
  %285 = vmatpush1.msra.mxu0 0.0
  %286 = vmatprep.subr.mxu0 0.0
  %287 = vmatpush1.msra.mxu0 0.0
  %288 = vmatprep.subr.mxu0 0.0
  %289 = vmatpush1.msra.mxu0 0.0
  %290 = vmatprep.subr.mxu0 0.0
  %291 = vmatpush1.msra.mxu0 0.0
  %292 = vmatprep.subr.mxu0 0.0
  %293 = vmatpush1.msra.mxu0 0.0
  %294 = vmatprep.subr.mxu0 0.0
  %295 = vmatpush1.msra.mxu0 0.0
  %296 = vmatprep.subr.mxu0 0.0
  %297 = vmatpush1.msra.mxu0 0.0
  %298 = vmatprep.subr.mxu0 0.0
  %299 = vmatpush1.msra.mxu0 0.0
  %300 = vmatprep.subr.mxu0 0.0
  %301 = vmatpush1.msra.mxu0 0.0
  %302 = vmatprep.mubr.f32.mxu0 0.0
  %303 = vmatmul.mubr.f32.gmra.mrb[0].mxu0 %v146
  %v304 = vpop.f32.mrb[0].mxu0
  %v305 = vadd.f32 0.0, %v304
  %v306 = vpop.f32.mrb[0].mxu0
  %307 = vmatprep.mubr.f32.mxu0 0.0
  %308 = vmatmul.mubr.f32.gmra.mrb[0].mxu0 %v149
  %v309 = vpop.f32.mrb[0].mxu0
  %v310 = vadd.f32 0.0, %v309
  %v311 = vpop.f32.mrb[0].mxu0
  %312 = vdwg.mxu0
  %v313 = vld [vmem:[%s3] sm:$0xff]
  %v314 = vld [vmem:[%s3 + $0x8] sm:$0xff]
  %v315 = vld [vmem:[%s3 + $0x10] sm:$0xff]
  %v316 = vld [vmem:[%s3 + $0x18] sm:$0x1]
  %v317 = vld [vmem:[%s3 + $0x20] sm:$0x1]
  %v318 = vld [vmem:[%s3 + $0x28] sm:$0x1]
  %320 = vset.pattern.permute.xlu0 0
  %321 = vperm.xlu0 %320, %v19
  %v322 = vpop.permute.xlu0 %321
  %325 = vset.pattern.permute.xlu0 0
  %326 = vperm.xlu0 %325, %v20
  %v327 = vpop.permute.xlu0 %326
  %v329 = vadd.f32 %v313, %v322
  %v330 = vadd.f32 %v314, %v322
  %v331 = vadd.f32 %v315, %v322
  %v332 = vadd.f32 %v316, %v327
  %v333 = vadd.f32 %v317, %v327
  %v334 = vadd.f32 %v318, %v327
  %v335 = vadd.f32 %v329, %v228
  %v336 = vadd.f32 %v330, %v230
  %v337 = vadd.f32 %v331, %v305
  %v338 = vadd.f32 %v332, %v234
  %v339 = vadd.f32 %v333, %v236
  %v340 = vadd.f32 %v334, %v310
  %341 = vst [vmem:[%s4] sm:$0xff] %v335
  %342 = vst [vmem:[%s4 + $0x8] sm:$0xff] %v336
  %vm343 = vcmask 556032
  %344 = vst.msk [vmem:[%s4 + $0x10] sm:$0xff] %vm343, %v337
  %345 = vst [vmem:[%s4 + $0x18] sm:$0x1] %v338
  %346 = vst [vmem:[%s4 + $0x20] sm:$0x1] %v339
  %vm347 = vcmask 548864
  %348 = vst.msk [vmem:[%s4 + $0x28] sm:$0x1] %vm347, %v340
  %s349 = scalar_lea.vmem %s2, 16
  %v350 = vld [vmem:[%s349] sm:$0x3f]
  %352 = vrot.lane.b32.xlu0 %v350, 19
  %v353 = vpop.permute.xlu0 %352
  %355 = vst.msk [vmem:[#allocation2] sm:$0x3f] %vm30, %v353
  %v356 = vld [vmem:[%s349] sm:$0x3f]
  %358 = vrot.lane.b32.xlu0 %v356, 21
  %v359 = vpop.permute.xlu0 %358
  %361 = vst.msk [vmem:[#allocation2] sm:$0x3f] %vm37, %v359
  %v362 = vld [vmem:[%s349] sm:$0x3f]
  %364 = vrot.lane.b32.xlu0 %v362, 23
  %v365 = vpop.permute.xlu0 %364
  %367 = vst.msk [vmem:[#allocation2] sm:$0x3f] %vm44, %v365
  %v368 = vld [vmem:[%s349] sm:$0x3f]
  %370 = vrot.lane.b32.xlu0 %v368, 25
  %v371 = vpop.permute.xlu0 %370
  %373 = vst.msk [vmem:[#allocation2] sm:$0x3f] %vm51, %v371
  %v374 = vld [vmem:[%s349] sm:$0x3f]
  %376 = vrot.lane.b32.xlu0 %v374, 27
  %v377 = vpop.permute.xlu0 %376
  %379 = vst.msk [vmem:[#allocation2] sm:$0x3f] %vm58, %v377
  %v380 = vld [vmem:[%s349] sm:$0x3f]
  %382 = vrot.lane.b32.xlu0 %v380, 29
  %v383 = vpop.permute.xlu0 %382
  %385 = vst.msk [vmem:[#allocation2] sm:$0x3f] %vm65, %v383
  %v386 = vld [vmem:[%s349] sm:$0x3f]
  %388 = vrot.lane.b32.xlu0 %v386, 31
  %v389 = vpop.permute.xlu0 %388
  %391 = vst.msk [vmem:[#allocation2] sm:$0x3f] %vm72, %v389
  %392 = vst.msk [vmem:[#allocation2 + $0x8] sm:$0x3f] %vm74, %v389
  %v393 = vld [vmem:[%s349] sm:$0x3f]
  %395 = vrot.lane.b32.xlu0 %v393, 33
  %v396 = vpop.permute.xlu0 %395
  %398 = vst.msk [vmem:[#allocation2 + $0x8] sm:$0x3f] %vm81, %v396
  %v399 = vld [vmem:[%s349 + $0x8] sm:$0x3f]
  %401 = vrot.lane.b32.xlu0 %v399, 35
  %v402 = vpop.permute.xlu0 %401
  %404 = vst.msk [vmem:[#allocation2 + $0x8] sm:$0x3f] %vm88, %v402
  %v405 = vld [vmem:[%s349 + $0x8] sm:$0x3f]
  %407 = vrot.lane.b32.xlu0 %v405, 37
  %v408 = vpop.permute.xlu0 %407
  %410 = vst.msk [vmem:[#allocation2 + $0x8] sm:$0x3f] %vm95, %v408
  %v411 = vld [vmem:[%s349 + $0x8] sm:$0x3f]
  %413 = vrot.lane.b32.xlu0 %v411, 39
  %v414 = vpop.permute.xlu0 %413
  %416 = vst.msk [vmem:[#allocation2 + $0x8] sm:$0x3f] %vm102, %v414
  %v417 = vld [vmem:[%s349 + $0x8] sm:$0x3f]
  %419 = vrot.lane.b32.xlu0 %v417, 41
  %v420 = vpop.permute.xlu0 %419
  %422 = vst.msk [vmem:[#allocation2 + $0x8] sm:$0x3f] %vm109, %v420
  %v423 = vld [vmem:[%s349 + $0x8] sm:$0x3f]
  %425 = vrot.lane.b32.xlu0 %v423, 43
  %v426 = vpop.permute.xlu0 %425
  %428 = vst.msk [vmem:[#allocation2 + $0x8] sm:$0x3f] %vm116, %v426
  %v429 = vld [vmem:[%s349 + $0x8] sm:$0x3f]
  %431 = vrot.lane.b32.xlu0 %v429, 45
  %v432 = vpop.permute.xlu0 %431
  %434 = vst.msk [vmem:[#allocation2 + $0x8] sm:$0x3f] %vm123, %v432
  %435 = vst.msk [vmem:[#allocation2 + $0x10] sm:$0x3f] %vm125, %v432
  %v436 = vld [vmem:[%s349 + $0x8] sm:$0x3f]
  %438 = vrot.lane.b32.xlu0 %v436, 47
  %v439 = vpop.permute.xlu0 %438
  %441 = vst.msk [vmem:[#allocation2 + $0x10] sm:$0x3f] %vm132, %v439
  %v442 = vld [vmem:[%s349 + $0x8] sm:$0x3f]
  %444 = vrot.lane.b32.xlu0 %v442, 49
  %v445 = vpop.permute.xlu0 %444
  %447 = vst.msk [vmem:[#allocation2 + $0x10] sm:$0x3f] %vm139, %v445
  %v448 = vld [vmem:[#allocation2] sm:$0x3f]
  %v449 = vld [vmem:[#allocation2 + $0x8] sm:$0x3f]
  %v450 = vld [vmem:[#allocation2 + $0x10] sm:$0x3f]
  %v452 = vsel %vm151, %v448, 0
  %v455 = vsel %vm151, %v449, 0
  %v458 = vsel %vm151, %v450, 0
  %460 = vmatprep.subr.mxu0 %v455
  %461 = vmatpush1.msra.mxu0 %v452
  %462 = vmatprep.subr.mxu0 0.0
  %463 = vmatpush1.msra.mxu0 0.0
  %464 = vmatprep.subr.mxu0 0.0
  %465 = vmatpush1.msra.mxu0 0.0
  %466 = vmatprep.subr.mxu0 0.0
  %467 = vmatpush1.msra.mxu0 0.0
  %468 = vmatprep.subr.mxu0 0.0
  %469 = vmatpush1.msra.mxu0 0.0
  %470 = vmatprep.subr.mxu0 0.0
  %471 = vmatpush1.msra.mxu0 0.0
  %472 = vmatprep.subr.mxu0 0.0
  %473 = vmatpush1.msra.mxu0 0.0
  %474 = vmatprep.subr.mxu0 0.0
  %475 = vmatpush1.msra.mxu0 0.0
  %476 = vmatprep.subr.mxu0 0.0
  %477 = vmatpush1.msra.mxu0 0.0
  %478 = vmatprep.subr.mxu0 0.0
  %479 = vmatpush1.msra.mxu0 0.0
  %480 = vmatprep.subr.mxu0 0.0
  %481 = vmatpush1.msra.mxu0 0.0
  %482 = vmatprep.subr.mxu0 0.0
  %483 = vmatpush1.msra.mxu0 0.0
  %484 = vmatprep.subr.mxu0 0.0
  %485 = vmatpush1.msra.mxu0 0.0
  %486 = vmatprep.subr.mxu0 0.0
  %487 = vmatpush1.msra.mxu0 0.0
  %488 = vmatprep.subr.mxu0 0.0
  %489 = vmatpush1.msra.mxu0 0.0
  %490 = vmatprep.subr.mxu0 0.0
  %491 = vmatpush1.msra.mxu0 0.0
  %492 = vmatprep.subr.mxu0 0.0
  %493 = vmatpush1.msra.mxu0 0.0
  %494 = vmatprep.subr.mxu0 0.0
  %495 = vmatpush1.msra.mxu0 0.0
  %496 = vmatprep.subr.mxu0 0.0
  %497 = vmatpush1.msra.mxu0 0.0
  %498 = vmatprep.subr.mxu0 0.0
  %499 = vmatpush1.msra.mxu0 0.0
  %500 = vmatprep.subr.mxu0 0.0
  %501 = vmatpush1.msra.mxu0 0.0
  %502 = vmatprep.subr.mxu0 0.0
  %503 = vmatpush1.msra.mxu0 0.0
  %504 = vmatprep.subr.mxu0 0.0
  %505 = vmatpush1.msra.mxu0 0.0
  %506 = vmatprep.subr.mxu0 0.0
  %507 = vmatpush1.msra.mxu0 0.0
  %508 = vmatprep.subr.mxu0 0.0
  %509 = vmatpush1.msra.mxu0 0.0
  %510 = vmatprep.subr.mxu0 0.0
  %511 = vmatpush1.msra.mxu0 0.0
  %512 = vmatprep.subr.mxu0 0.0
  %513 = vmatpush1.msra.mxu0 0.0
  %514 = vmatprep.subr.mxu0 0.0
  %515 = vmatpush1.msra.mxu0 0.0
  %516 = vmatprep.subr.mxu0 0.0
  %517 = vmatpush1.msra.mxu0 0.0
  %518 = vmatprep.subr.mxu0 0.0
  %519 = vmatpush1.msra.mxu0 0.0
  %520 = vmatprep.subr.mxu0 0.0
  %521 = vmatpush1.msra.mxu0 0.0
  %522 = vmatprep.subr.mxu0 0.0
  %523 = vmatpush1.msra.mxu0 0.0
  %524 = vmatprep.mubr.f32.mxu0 0.0
  %525 = vmatmul.mubr.f32.gmra.mrb[0].mxu0 %v146
  %v526 = vpop.f32.mrb[0].mxu0
  %v527 = vadd.f32 0.0, %v526
  %v528 = vpop.f32.mrb[0].mxu0
  %v529 = vadd.f32 0.0, %v528
  %530 = vmatprep.mubr.f32.mxu0 0.0
  %531 = vmatmul.mubr.f32.gmra.mrb[0].mxu0 %v149
  %v532 = vpop.f32.mrb[0].mxu0
  %v533 = vadd.f32 0.0, %v532
  %v534 = vpop.f32.mrb[0].mxu0
  %v535 = vadd.f32 0.0, %v534
  %536 = vdwg.mxu0
  %537 = vmatprep.subr.mxu0 0.0
  %538 = vmatpush1.msra.mxu0 %v458
  %539 = vmatprep.subr.mxu0 0.0
  %540 = vmatpush1.msra.mxu0 0.0
  %541 = vmatprep.subr.mxu0 0.0
  %542 = vmatpush1.msra.mxu0 0.0
  %543 = vmatprep.subr.mxu0 0.0
  %544 = vmatpush1.msra.mxu0 0.0
  %545 = vmatprep.subr.mxu0 0.0
  %546 = vmatpush1.msra.mxu0 0.0
  %547 = vmatprep.subr.mxu0 0.0
  %548 = vmatpush1.msra.mxu0 0.0
  %549 = vmatprep.subr.mxu0 0.0
  %550 = vmatpush1.msra.mxu0 0.0
  %551 = vmatprep.subr.mxu0 0.0
  %552 = vmatpush1.msra.mxu0 0.0
  %553 = vmatprep.subr.mxu0 0.0
  %554 = vmatpush1.msra.mxu0 0.0
  %555 = vmatprep.subr.mxu0 0.0
  %556 = vmatpush1.msra.mxu0 0.0
  %557 = vmatprep.subr.mxu0 0.0
  %558 = vmatpush1.msra.mxu0 0.0
  %559 = vmatprep.subr.mxu0 0.0
  %560 = vmatpush1.msra.mxu0 0.0
  %561 = vmatprep.subr.mxu0 0.0
  %562 = vmatpush1.msra.mxu0 0.0
  %563 = vmatprep.subr.mxu0 0.0
  %564 = vmatpush1.msra.mxu0 0.0
  %565 = vmatprep.subr.mxu0 0.0
  %566 = vmatpush1.msra.mxu0 0.0
  %567 = vmatprep.subr.mxu0 0.0
  %568 = vmatpush1.msra.mxu0 0.0
  %569 = vmatprep.subr.mxu0 0.0
  %570 = vmatpush1.msra.mxu0 0.0
  %571 = vmatprep.subr.mxu0 0.0
  %572 = vmatpush1.msra.mxu0 0.0
  %573 = vmatprep.subr.mxu0 0.0
  %574 = vmatpush1.msra.mxu0 0.0
  %575 = vmatprep.subr.mxu0 0.0
  %576 = vmatpush1.msra.mxu0 0.0
  %577 = vmatprep.subr.mxu0 0.0
  %578 = vmatpush1.msra.mxu0 0.0
  %579 = vmatprep.subr.mxu0 0.0
  %580 = vmatpush1.msra.mxu0 0.0
  %581 = vmatprep.subr.mxu0 0.0
  %582 = vmatpush1.msra.mxu0 0.0
  %583 = vmatprep.subr.mxu0 0.0
  %584 = vmatpush1.msra.mxu0 0.0
  %585 = vmatprep.subr.mxu0 0.0
  %586 = vmatpush1.msra.mxu0 0.0
  %587 = vmatprep.subr.mxu0 0.0
  %588 = vmatpush1.msra.mxu0 0.0
  %589 = vmatprep.subr.mxu0 0.0
  %590 = vmatpush1.msra.mxu0 0.0
  %591 = vmatprep.subr.mxu0 0.0
  %592 = vmatpush1.msra.mxu0 0.0
  %593 = vmatprep.subr.mxu0 0.0
  %594 = vmatpush1.msra.mxu0 0.0
  %595 = vmatprep.subr.mxu0 0.0
  %596 = vmatpush1.msra.mxu0 0.0
  %597 = vmatprep.subr.mxu0 0.0
  %598 = vmatpush1.msra.mxu0 0.0
  %599 = vmatprep.subr.mxu0 0.0
  %600 = vmatpush1.msra.mxu0 0.0
  %601 = vmatprep.mubr.f32.mxu0 0.0
  %602 = vmatmul.mubr.f32.gmra.mrb[0].mxu0 %v146
  %v603 = vpop.f32.mrb[0].mxu0
  %v604 = vadd.f32 0.0, %v603
  %v605 = vpop.f32.mrb[0].mxu0
  %606 = vmatprep.mubr.f32.mxu0 0.0
  %607 = vmatmul.mubr.f32.gmra.mrb[0].mxu0 %v149
  %v608 = vpop.f32.mrb[0].mxu0
  %v609 = vadd.f32 0.0, %v608
  %v610 = vpop.f32.mrb[0].mxu0
  %611 = vdwg.mxu0
  %s612 = scalar_lea.vmem %s3, 48
  %v613 = vld [vmem:[%s612] sm:$0xff]
  %v614 = vld [vmem:[%s612 + $0x8] sm:$0xff]
  %v615 = vld [vmem:[%s612 + $0x10] sm:$0xff]
  %v616 = vld [vmem:[%s612 + $0x18] sm:$0x1]
  %v617 = vld [vmem:[%s612 + $0x20] sm:$0x1]
  %v618 = vld [vmem:[%s612 + $0x28] sm:$0x1]
  %v619 = vadd.f32 %v613, %v322
  %v620 = vadd.f32 %v614, %v322
  %v621 = vadd.f32 %v615, %v322
  %v622 = vadd.f32 %v616, %v327
  %v623 = vadd.f32 %v617, %v327
  %v624 = vadd.f32 %v618, %v327
  %v625 = vadd.f32 %v619, %v527
  %v626 = vadd.f32 %v620, %v529
  %v627 = vadd.f32 %v621, %v604
  %v628 = vadd.f32 %v622, %v533
  %v629 = vadd.f32 %v623, %v535
  %v630 = vadd.f32 %v624, %v609
  %s631 = scalar_lea.vmem %s4, 48
  %632 = vst [vmem:[%s631] sm:$0xff] %v625
  %633 = vst [vmem:[%s631 + $0x8] sm:$0xff] %v626
  %634 = vst.msk [vmem:[%s631 + $0x10] sm:$0xff] %vm343, %v627
  %635 = vst [vmem:[%s631 + $0x18] sm:$0x1] %v628
  %636 = vst [vmem:[%s631 + $0x20] sm:$0x1] %v629
  %637 = vst.msk [vmem:[%s631 + $0x28] sm:$0x1] %vm347, %v630
  %s638 = scalar_lea.vmem %s2, 32
  %v639 = vld [vmem:[%s638] sm:$0x3f]
  %641 = vrot.lane.b32.xlu0 %v639, 19
  %v642 = vpop.permute.xlu0 %641
  %644 = vst.msk [vmem:[#allocation2] sm:$0x3f] %vm30, %v642
  %v645 = vld [vmem:[%s638] sm:$0x3f]
  %647 = vrot.lane.b32.xlu0 %v645, 21
  %v648 = vpop.permute.xlu0 %647
  %650 = vst.msk [vmem:[#allocation2] sm:$0x3f] %vm37, %v648
  %v651 = vld [vmem:[%s638] sm:$0x3f]
  %653 = vrot.lane.b32.xlu0 %v651, 23
  %v654 = vpop.permute.xlu0 %653
  %656 = vst.msk [vmem:[#allocation2] sm:$0x3f] %vm44, %v654
  %v657 = vld [vmem:[%s638] sm:$0x3f]
  %659 = vrot.lane.b32.xlu0 %v657, 25
  %v660 = vpop.permute.xlu0 %659
  %662 = vst.msk [vmem:[#allocation2] sm:$0x3f] %vm51, %v660
  %v663 = vld [vmem:[%s638] sm:$0x3f]
  %665 = vrot.lane.b32.xlu0 %v663, 27
  %v666 = vpop.permute.xlu0 %665
  %668 = vst.msk [vmem:[#allocation2] sm:$0x3f] %vm58, %v666
  %v669 = vld [vmem:[%s638] sm:$0x3f]
  %671 = vrot.lane.b32.xlu0 %v669, 29
  %v672 = vpop.permute.xlu0 %671
  %674 = vst.msk [vmem:[#allocation2] sm:$0x3f] %vm65, %v672
  %v675 = vld [vmem:[%s638] sm:$0x3f]
  %677 = vrot.lane.b32.xlu0 %v675, 31
  %v678 = vpop.permute.xlu0 %677
  %680 = vst.msk [vmem:[#allocation2] sm:$0x3f] %vm72, %v678
  %681 = vst.msk [vmem:[#allocation2 + $0x8] sm:$0x3f] %vm74, %v678
  %v682 = vld [vmem:[%s638] sm:$0x3f]
  %684 = vrot.lane.b32.xlu0 %v682, 33
  %v685 = vpop.permute.xlu0 %684
  %687 = vst.msk [vmem:[#allocation2 + $0x8] sm:$0x3f] %vm81, %v685
  %v688 = vld [vmem:[%s638 + $0x8] sm:$0x3f]
  %690 = vrot.lane.b32.xlu0 %v688, 35
  %v691 = vpop.permute.xlu0 %690
  %693 = vst.msk [vmem:[#allocation2 + $0x8] sm:$0x3f] %vm88, %v691
  %v694 = vld [vmem:[%s638 + $0x8] sm:$0x3f]
  %696 = vrot.lane.b32.xlu0 %v694, 37
  %v697 = vpop.permute.xlu0 %696
  %699 = vst.msk [vmem:[#allocation2 + $0x8] sm:$0x3f] %vm95, %v697
  %v700 = vld [vmem:[%s638 + $0x8] sm:$0x3f]
  %702 = vrot.lane.b32.xlu0 %v700, 39
  %v703 = vpop.permute.xlu0 %702
  %705 = vst.msk [vmem:[#allocation2 + $0x8] sm:$0x3f] %vm102, %v703
  %v706 = vld [vmem:[%s638 + $0x8] sm:$0x3f]
  %708 = vrot.lane.b32.xlu0 %v706, 41
  %v709 = vpop.permute.xlu0 %708
  %711 = vst.msk [vmem:[#allocation2 + $0x8] sm:$0x3f] %vm109, %v709
  %v712 = vld [vmem:[%s638 + $0x8] sm:$0x3f]
  %714 = vrot.lane.b32.xlu0 %v712, 43
  %v715 = vpop.permute.xlu0 %714
  %717 = vst.msk [vmem:[#allocation2 + $0x8] sm:$0x3f] %vm116, %v715
  %v718 = vld [vmem:[%s638 + $0x8] sm:$0x3f]
  %720 = vrot.lane.b32.xlu0 %v718, 45
  %v721 = vpop.permute.xlu0 %720
  %723 = vst.msk [vmem:[#allocation2 + $0x8] sm:$0x3f] %vm123, %v721
  %724 = vst.msk [vmem:[#allocation2 + $0x10] sm:$0x3f] %vm125, %v721
  %v725 = vld [vmem:[%s638 + $0x8] sm:$0x3f]
  %727 = vrot.lane.b32.xlu0 %v725, 47
  %v728 = vpop.permute.xlu0 %727
  %730 = vst.msk [vmem:[#allocation2 + $0x10] sm:$0x3f] %vm132, %v728
  %v731 = vld [vmem:[%s638 + $0x8] sm:$0x3f]
  %733 = vrot.lane.b32.xlu0 %v731, 49
  %v734 = vpop.permute.xlu0 %733
  %736 = vst.msk [vmem:[#allocation2 + $0x10] sm:$0x3f] %vm139, %v734
  %v737 = vld [vmem:[#allocation2] sm:$0x3f]
  %v738 = vld [vmem:[#allocation2 + $0x8] sm:$0x3f]
  %v739 = vld [vmem:[#allocation2 + $0x10] sm:$0x3f]
  %v741 = vsel %vm151, %v737, 0
  %v744 = vsel %vm151, %v738, 0
  %v747 = vsel %vm151, %v739, 0
  %749 = vmatprep.subr.mxu0 %v744
  %750 = vmatpush1.msra.mxu0 %v741
  %751 = vmatprep.subr.mxu0 0.0
  %752 = vmatpush1.msra.mxu0 0.0
  %753 = vmatprep.subr.mxu0 0.0
  %754 = vmatpush1.msra.mxu0 0.0
  %755 = vmatprep.subr.mxu0 0.0
  %756 = vmatpush1.msra.mxu0 0.0
  %757 = vmatprep.subr.mxu0 0.0
  %758 = vmatpush1.msra.mxu0 0.0
  %759 = vmatprep.subr.mxu0 0.0
  %760 = vmatpush1.msra.mxu0 0.0
  %761 = vmatprep.subr.mxu0 0.0
  %762 = vmatpush1.msra.mxu0 0.0
  %763 = vmatprep.subr.mxu0 0.0
  %764 = vmatpush1.msra.mxu0 0.0
  %765 = vmatprep.subr.mxu0 0.0
  %766 = vmatpush1.msra.mxu0 0.0
  %767 = vmatprep.subr.mxu0 0.0
  %768 = vmatpush1.msra.mxu0 0.0
  %769 = vmatprep.subr.mxu0 0.0
  %770 = vmatpush1.msra.mxu0 0.0
  %771 = vmatprep.subr.mxu0 0.0
  %772 = vmatpush1.msra.mxu0 0.0
  %773 = vmatprep.subr.mxu0 0.0
  %774 = vmatpush1.msra.mxu0 0.0
  %775 = vmatprep.subr.mxu0 0.0
  %776 = vmatpush1.msra.mxu0 0.0
  %777 = vmatprep.subr.mxu0 0.0
  %778 = vmatpush1.msra.mxu0 0.0
  %779 = vmatprep.subr.mxu0 0.0
  %780 = vmatpush1.msra.mxu0 0.0
  %781 = vmatprep.subr.mxu0 0.0
  %782 = vmatpush1.msra.mxu0 0.0
  %783 = vmatprep.subr.mxu0 0.0
  %784 = vmatpush1.msra.mxu0 0.0
  %785 = vmatprep.subr.mxu0 0.0
  %786 = vmatpush1.msra.mxu0 0.0
  %787 = vmatprep.subr.mxu0 0.0
  %788 = vmatpush1.msra.mxu0 0.0
  %789 = vmatprep.subr.mxu0 0.0
  %790 = vmatpush1.msra.mxu0 0.0
  %791 = vmatprep.subr.mxu0 0.0
  %792 = vmatpush1.msra.mxu0 0.0
  %793 = vmatprep.subr.mxu0 0.0
  %794 = vmatpush1.msra.mxu0 0.0
  %795 = vmatprep.subr.mxu0 0.0
  %796 = vmatpush1.msra.mxu0 0.0
  %797 = vmatprep.subr.mxu0 0.0
  %798 = vmatpush1.msra.mxu0 0.0
  %799 = vmatprep.subr.mxu0 0.0
  %800 = vmatpush1.msra.mxu0 0.0
  %801 = vmatprep.subr.mxu0 0.0
  %802 = vmatpush1.msra.mxu0 0.0
  %803 = vmatprep.subr.mxu0 0.0
  %804 = vmatpush1.msra.mxu0 0.0
  %805 = vmatprep.subr.mxu0 0.0
  %806 = vmatpush1.msra.mxu0 0.0
  %807 = vmatprep.subr.mxu0 0.0
  %808 = vmatpush1.msra.mxu0 0.0
  %809 = vmatprep.subr.mxu0 0.0
  %810 = vmatpush1.msra.mxu0 0.0
  %811 = vmatprep.subr.mxu0 0.0
  %812 = vmatpush1.msra.mxu0 0.0
  %813 = vmatprep.mubr.f32.mxu0 0.0
  %814 = vmatmul.mubr.f32.gmra.mrb[0].mxu0 %v146
  %v815 = vpop.f32.mrb[0].mxu0
  %v816 = vadd.f32 0.0, %v815
  %v817 = vpop.f32.mrb[0].mxu0
  %v818 = vadd.f32 0.0, %v817
  %819 = vmatprep.mubr.f32.mxu0 0.0
  %820 = vmatmul.mubr.f32.gmra.mrb[0].mxu0 %v149
  %v821 = vpop.f32.mrb[0].mxu0
  %v822 = vadd.f32 0.0, %v821
  %v823 = vpop.f32.mrb[0].mxu0
  %v824 = vadd.f32 0.0, %v823
  %825 = vdwg.mxu0
  %826 = vmatprep.subr.mxu0 0.0
  %827 = vmatpush1.msra.mxu0 %v747
  %828 = vmatprep.subr.mxu0 0.0
  %829 = vmatpush1.msra.mxu0 0.0
  %830 = vmatprep.subr.mxu0 0.0
  %831 = vmatpush1.msra.mxu0 0.0
  %832 = vmatprep.subr.mxu0 0.0
  %833 = vmatpush1.msra.mxu0 0.0
  %834 = vmatprep.subr.mxu0 0.0
  %835 = vmatpush1.msra.mxu0 0.0
  %836 = vmatprep.subr.mxu0 0.0
  %837 = vmatpush1.msra.mxu0 0.0
  %838 = vmatprep.subr.mxu0 0.0
  %839 = vmatpush1.msra.mxu0 0.0
  %840 = vmatprep.subr.mxu0 0.0
  %841 = vmatpush1.msra.mxu0 0.0
  %842 = vmatprep.subr.mxu0 0.0
  %843 = vmatpush1.msra.mxu0 0.0
  %844 = vmatprep.subr.mxu0 0.0
  %845 = vmatpush1.msra.mxu0 0.0
  %846 = vmatprep.subr.mxu0 0.0
  %847 = vmatpush1.msra.mxu0 0.0
  %848 = vmatprep.subr.mxu0 0.0
  %849 = vmatpush1.msra.mxu0 0.0
  %850 = vmatprep.subr.mxu0 0.0
  %851 = vmatpush1.msra.mxu0 0.0
  %852 = vmatprep.subr.mxu0 0.0
  %853 = vmatpush1.msra.mxu0 0.0
  %854 = vmatprep.subr.mxu0 0.0
  %855 = vmatpush1.msra.mxu0 0.0
  %856 = vmatprep.subr.mxu0 0.0
  %857 = vmatpush1.msra.mxu0 0.0
  %858 = vmatprep.subr.mxu0 0.0
  %859 = vmatpush1.msra.mxu0 0.0
  %860 = vmatprep.subr.mxu0 0.0
  %861 = vmatpush1.msra.mxu0 0.0
  %862 = vmatprep.subr.mxu0 0.0
  %863 = vmatpush1.msra.mxu0 0.0
  %864 = vmatprep.subr.mxu0 0.0
  %865 = vmatpush1.msra.mxu0 0.0
  %866 = vmatprep.subr.mxu0 0.0
  %867 = vmatpush1.msra.mxu0 0.0
  %868 = vmatprep.subr.mxu0 0.0
  %869 = vmatpush1.msra.mxu0 0.0
  %870 = vmatprep.subr.mxu0 0.0
  %871 = vmatpush1.msra.mxu0 0.0
  %872 = vmatprep.subr.mxu0 0.0
  %873 = vmatpush1.msra.mxu0 0.0
  %874 = vmatprep.subr.mxu0 0.0
  %875 = vmatpush1.msra.mxu0 0.0
  %876 = vmatprep.subr.mxu0 0.0
  %877 = vmatpush1.msra.mxu0 0.0
  %878 = vmatprep.subr.mxu0 0.0
  %879 = vmatpush1.msra.mxu0 0.0
  %880 = vmatprep.subr.mxu0 0.0
  %881 = vmatpush1.msra.mxu0 0.0
  %882 = vmatprep.subr.mxu0 0.0
  %883 = vmatpush1.msra.mxu0 0.0
  %884 = vmatprep.subr.mxu0 0.0
  %885 = vmatpush1.msra.mxu0 0.0
  %886 = vmatprep.subr.mxu0 0.0
  %887 = vmatpush1.msra.mxu0 0.0
  %888 = vmatprep.subr.mxu0 0.0
  %889 = vmatpush1.msra.mxu0 0.0
  %890 = vmatprep.mubr.f32.mxu0 0.0
  %891 = vmatmul.mubr.f32.gmra.mrb[0].mxu0 %v146
  %v892 = vpop.f32.mrb[0].mxu0
  %v893 = vadd.f32 0.0, %v892
  %v894 = vpop.f32.mrb[0].mxu0
  %895 = vmatprep.mubr.f32.mxu0 0.0
  %896 = vmatmul.mubr.f32.gmra.mrb[0].mxu0 %v149
  %v897 = vpop.f32.mrb[0].mxu0
  %v898 = vadd.f32 0.0, %v897
  %v899 = vpop.f32.mrb[0].mxu0
  %900 = vdwg.mxu0
  %s901 = scalar_lea.vmem %s3, 96
  %v902 = vld [vmem:[%s901] sm:$0xff]
  %v903 = vld [vmem:[%s901 + $0x8] sm:$0xff]
  %v904 = vld [vmem:[%s901 + $0x10] sm:$0xff]
  %v905 = vld [vmem:[%s901 + $0x18] sm:$0x1]
  %v906 = vld [vmem:[%s901 + $0x20] sm:$0x1]
  %v907 = vld [vmem:[%s901 + $0x28] sm:$0x1]
  %v908 = vadd.f32 %v902, %v322
  %v909 = vadd.f32 %v903, %v322
  %v910 = vadd.f32 %v904, %v322
  %v911 = vadd.f32 %v905, %v327
  %v912 = vadd.f32 %v906, %v327
  %v913 = vadd.f32 %v907, %v327
  %v914 = vadd.f32 %v908, %v816
  %v915 = vadd.f32 %v909, %v818
  %v916 = vadd.f32 %v910, %v893
  %v917 = vadd.f32 %v911, %v822
  %v918 = vadd.f32 %v912, %v824
  %v919 = vadd.f32 %v913, %v898
  %s920 = scalar_lea.vmem %s4, 96
  %921 = vst [vmem:[%s920] sm:$0xff] %v914
  %922 = vst [vmem:[%s920 + $0x8] sm:$0xff] %v915
  %923 = vst.msk [vmem:[%s920 + $0x10] sm:$0xff] %vm343, %v916
  %924 = vst [vmem:[%s920 + $0x18] sm:$0x1] %v917
  %925 = vst [vmem:[%s920 + $0x20] sm:$0x1] %v918
  %926 = vst.msk [vmem:[%s920 + $0x28] sm:$0x1] %vm347, %v919
  %s927 = scalar_lea.vmem %s2, 48
  %v928 = vld [vmem:[%s927] sm:$0x3f]
  %930 = vrot.lane.b32.xlu0 %v928, 19
  %v931 = vpop.permute.xlu0 %930
  %933 = vst.msk [vmem:[#allocation2] sm:$0x3f] %vm30, %v931
  %v934 = vld [vmem:[%s927] sm:$0x3f]
  %936 = vrot.lane.b32.xlu0 %v934, 21
  %v937 = vpop.permute.xlu0 %936
  %939 = vst.msk [vmem:[#allocation2] sm:$0x3f] %vm37, %v937
  %v940 = vld [vmem:[%s927] sm:$0x3f]
  %942 = vrot.lane.b32.xlu0 %v940, 23
  %v943 = vpop.permute.xlu0 %942
  %945 = vst.msk [vmem:[#allocation2] sm:$0x3f] %vm44, %v943
  %v946 = vld [vmem:[%s927] sm:$0x3f]
  %948 = vrot.lane.b32.xlu0 %v946, 25
  %v949 = vpop.permute.xlu0 %948
  %951 = vst.msk [vmem:[#allocation2] sm:$0x3f] %vm51, %v949
  %v952 = vld [vmem:[%s927] sm:$0x3f]
  %954 = vrot.lane.b32.xlu0 %v952, 27
  %v955 = vpop.permute.xlu0 %954
  %957 = vst.msk [vmem:[#allocation2] sm:$0x3f] %vm58, %v955
  %v958 = vld [vmem:[%s927] sm:$0x3f]
  %960 = vrot.lane.b32.xlu0 %v958, 29
  %v961 = vpop.permute.xlu0 %960
  %963 = vst.msk [vmem:[#allocation2] sm:$0x3f] %vm65, %v961
  %v964 = vld [vmem:[%s927] sm:$0x3f]
  %966 = vrot.lane.b32.xlu0 %v964, 31
  %v967 = vpop.permute.xlu0 %966
  %969 = vst.msk [vmem:[#allocation2] sm:$0x3f] %vm72, %v967
  %970 = vst.msk [vmem:[#allocation2 + $0x8] sm:$0x3f] %vm74, %v967
  %v971 = vld [vmem:[%s927] sm:$0x3f]
  %973 = vrot.lane.b32.xlu0 %v971, 33
  %v974 = vpop.permute.xlu0 %973
  %976 = vst.msk [vmem:[#allocation2 + $0x8] sm:$0x3f] %vm81, %v974
  %v977 = vld [vmem:[%s927 + $0x8] sm:$0x3f]
  %979 = vrot.lane.b32.xlu0 %v977, 35
  %v980 = vpop.permute.xlu0 %979
  %982 = vst.msk [vmem:[#allocation2 + $0x8] sm:$0x3f] %vm88, %v980
  %v983 = vld [vmem:[%s927 + $0x8] sm:$0x3f]
  %985 = vrot.lane.b32.xlu0 %v983, 37
  %v986 = vpop.permute.xlu0 %985
  %988 = vst.msk [vmem:[#allocation2 + $0x8] sm:$0x3f] %vm95, %v986
  %v989 = vld [vmem:[%s927 + $0x8] sm:$0x3f]
  %991 = vrot.lane.b32.xlu0 %v989, 39
  %v992 = vpop.permute.xlu0 %991
  %994 = vst.msk [vmem:[#allocation2 + $0x8] sm:$0x3f] %vm102, %v992
  %v995 = vld [vmem:[%s927 + $0x8] sm:$0x3f]
  %997 = vrot.lane.b32.xlu0 %v995, 41
  %v998 = vpop.permute.xlu0 %997
  %1000 = vst.msk [vmem:[#allocation2 + $0x8] sm:$0x3f] %vm109, %v998
  %v1001 = vld [vmem:[%s927 + $0x8] sm:$0x3f]
  %1003 = vrot.lane.b32.xlu0 %v1001, 43
  %v1004 = vpop.permute.xlu0 %1003
  %1006 = vst.msk [vmem:[#allocation2 + $0x8] sm:$0x3f] %vm116, %v1004
  %v1007 = vld [vmem:[%s927 + $0x8] sm:$0x3f]
  %1009 = vrot.lane.b32.xlu0 %v1007, 45
  %v1010 = vpop.permute.xlu0 %1009
  %1012 = vst.msk [vmem:[#allocation2 + $0x8] sm:$0x3f] %vm123, %v1010
  %1013 = vst.msk [vmem:[#allocation2 + $0x10] sm:$0x3f] %vm125, %v1010
  %v1014 = vld [vmem:[%s927 + $0x8] sm:$0x3f]
  %1016 = vrot.lane.b32.xlu0 %v1014, 47
  %v1017 = vpop.permute.xlu0 %1016
  %1019 = vst.msk [vmem:[#allocation2 + $0x10] sm:$0x3f] %vm132, %v1017
  %v1020 = vld [vmem:[%s927 + $0x8] sm:$0x3f]
  %1022 = vrot.lane.b32.xlu0 %v1020, 49
  %v1023 = vpop.permute.xlu0 %1022
  %1025 = vst.msk [vmem:[#allocation2 + $0x10] sm:$0x3f] %vm139, %v1023
  %v1026 = vld [vmem:[#allocation2] sm:$0x3f]
  %v1027 = vld [vmem:[#allocation2 + $0x8] sm:$0x3f]
  %v1028 = vld [vmem:[#allocation2 + $0x10] sm:$0x3f]
  %v1030 = vsel %vm151, %v1026, 0
  %v1033 = vsel %vm151, %v1027, 0
  %v1036 = vsel %vm151, %v1028, 0
  %1038 = vmatprep.subr.mxu0 %v1033
  %1039 = vmatpush1.msra.mxu0 %v1030
  %1040 = vmatprep.subr.mxu0 0.0
  %1041 = vmatpush1.msra.mxu0 0.0
  %1042 = vmatprep.subr.mxu0 0.0
  %1043 = vmatpush1.msra.mxu0 0.0
  %1044 = vmatprep.subr.mxu0 0.0
  %1045 = vmatpush1.msra.mxu0 0.0
  %1046 = vmatprep.subr.mxu0 0.0
  %1047 = vmatpush1.msra.mxu0 0.0
  %1048 = vmatprep.subr.mxu0 0.0
  %1049 = vmatpush1.msra.mxu0 0.0
  %1050 = vmatprep.subr.mxu0 0.0
  %1051 = vmatpush1.msra.mxu0 0.0
  %1052 = vmatprep.subr.mxu0 0.0
  %1053 = vmatpush1.msra.mxu0 0.0
  %1054 = vmatprep.subr.mxu0 0.0
  %1055 = vmatpush1.msra.mxu0 0.0
  %1056 = vmatprep.subr.mxu0 0.0
  %1057 = vmatpush1.msra.mxu0 0.0
  %1058 = vmatprep.subr.mxu0 0.0
  %1059 = vmatpush1.msra.mxu0 0.0
  %1060 = vmatprep.subr.mxu0 0.0
  %1061 = vmatpush1.msra.mxu0 0.0
  %1062 = vmatprep.subr.mxu0 0.0
  %1063 = vmatpush1.msra.mxu0 0.0
  %1064 = vmatprep.subr.mxu0 0.0
  %1065 = vmatpush1.msra.mxu0 0.0
  %1066 = vmatprep.subr.mxu0 0.0
  %1067 = vmatpush1.msra.mxu0 0.0
  %1068 = vmatprep.subr.mxu0 0.0
  %1069 = vmatpush1.msra.mxu0 0.0
  %1070 = vmatprep.subr.mxu0 0.0
  %1071 = vmatpush1.msra.mxu0 0.0
  %1072 = vmatprep.subr.mxu0 0.0
  %1073 = vmatpush1.msra.mxu0 0.0
  %1074 = vmatprep.subr.mxu0 0.0
  %1075 = vmatpush1.msra.mxu0 0.0
  %1076 = vmatprep.subr.mxu0 0.0
  %1077 = vmatpush1.msra.mxu0 0.0
  %1078 = vmatprep.subr.mxu0 0.0
  %1079 = vmatpush1.msra.mxu0 0.0
  %1080 = vmatprep.subr.mxu0 0.0
  %1081 = vmatpush1.msra.mxu0 0.0
  %1082 = vmatprep.subr.mxu0 0.0
  %1083 = vmatpush1.msra.mxu0 0.0
  %1084 = vmatprep.subr.mxu0 0.0
  %1085 = vmatpush1.msra.mxu0 0.0
  %1086 = vmatprep.subr.mxu0 0.0
  %1087 = vmatpush1.msra.mxu0 0.0
  %1088 = vmatprep.subr.mxu0 0.0
  %1089 = vmatpush1.msra.mxu0 0.0
  %1090 = vmatprep.subr.mxu0 0.0
  %1091 = vmatpush1.msra.mxu0 0.0
  %1092 = vmatprep.subr.mxu0 0.0
  %1093 = vmatpush1.msra.mxu0 0.0
  %1094 = vmatprep.subr.mxu0 0.0
  %1095 = vmatpush1.msra.mxu0 0.0
  %1096 = vmatprep.subr.mxu0 0.0
  %1097 = vmatpush1.msra.mxu0 0.0
  %1098 = vmatprep.subr.mxu0 0.0
  %1099 = vmatpush1.msra.mxu0 0.0
  %1100 = vmatprep.subr.mxu0 0.0
  %1101 = vmatpush1.msra.mxu0 0.0
  %1102 = vmatprep.mubr.f32.mxu0 0.0
  %1103 = vmatmul.mubr.f32.gmra.mrb[0].mxu0 %v146
  %v1104 = vpop.f32.mrb[0].mxu0
  %v1105 = vadd.f32 0.0, %v1104
  %v1106 = vpop.f32.mrb[0].mxu0
  %v1107 = vadd.f32 0.0, %v1106
  %1108 = vmatprep.mubr.f32.mxu0 0.0
  %1109 = vmatmul.mubr.f32.gmra.mrb[0].mxu0 %v149
  %v1110 = vpop.f32.mrb[0].mxu0
  %v1111 = vadd.f32 0.0, %v1110
  %v1112 = vpop.f32.mrb[0].mxu0
  %v1113 = vadd.f32 0.0, %v1112
  %1114 = vdwg.mxu0
  %1115 = vmatprep.subr.mxu0 0.0
  %1116 = vmatpush1.msra.mxu0 %v1036
  %1117 = vmatprep.subr.mxu0 0.0
  %1118 = vmatpush1.msra.mxu0 0.0
  %1119 = vmatprep.subr.mxu0 0.0
  %1120 = vmatpush1.msra.mxu0 0.0
  %1121 = vmatprep.subr.mxu0 0.0
  %1122 = vmatpush1.msra.mxu0 0.0
  %1123 = vmatprep.subr.mxu0 0.0
  %1124 = vmatpush1.msra.mxu0 0.0
  %1125 = vmatprep.subr.mxu0 0.0
  %1126 = vmatpush1.msra.mxu0 0.0
  %1127 = vmatprep.subr.mxu0 0.0
  %1128 = vmatpush1.msra.mxu0 0.0
  %1129 = vmatprep.subr.mxu0 0.0
  %1130 = vmatpush1.msra.mxu0 0.0
  %1131 = vmatprep.subr.mxu0 0.0
  %1132 = vmatpush1.msra.mxu0 0.0
  %1133 = vmatprep.subr.mxu0 0.0
  %1134 = vmatpush1.msra.mxu0 0.0
  %1135 = vmatprep.subr.mxu0 0.0
  %1136 = vmatpush1.msra.mxu0 0.0
  %1137 = vmatprep.subr.mxu0 0.0
  %1138 = vmatpush1.msra.mxu0 0.0
  %1139 = vmatprep.subr.mxu0 0.0
  %1140 = vmatpush1.msra.mxu0 0.0
  %1141 = vmatprep.subr.mxu0 0.0
  %1142 = vmatpush1.msra.mxu0 0.0
  %1143 = vmatprep.subr.mxu0 0.0
  %1144 = vmatpush1.msra.mxu0 0.0
  %1145 = vmatprep.subr.mxu0 0.0
  %1146 = vmatpush1.msra.mxu0 0.0
  %1147 = vmatprep.subr.mxu0 0.0
  %1148 = vmatpush1.msra.mxu0 0.0
  %1149 = vmatprep.subr.mxu0 0.0
  %1150 = vmatpush1.msra.mxu0 0.0
  %1151 = vmatprep.subr.mxu0 0.0
  %1152 = vmatpush1.msra.mxu0 0.0
  %1153 = vmatprep.subr.mxu0 0.0
  %1154 = vmatpush1.msra.mxu0 0.0
  %1155 = vmatprep.subr.mxu0 0.0
  %1156 = vmatpush1.msra.mxu0 0.0
  %1157 = vmatprep.subr.mxu0 0.0
  %1158 = vmatpush1.msra.mxu0 0.0
  %1159 = vmatprep.subr.mxu0 0.0
  %1160 = vmatpush1.msra.mxu0 0.0
  %1161 = vmatprep.subr.mxu0 0.0
  %1162 = vmatpush1.msra.mxu0 0.0
  %1163 = vmatprep.subr.mxu0 0.0
  %1164 = vmatpush1.msra.mxu0 0.0
  %1165 = vmatprep.subr.mxu0 0.0
  %1166 = vmatpush1.msra.mxu0 0.0
  %1167 = vmatprep.subr.mxu0 0.0
  %1168 = vmatpush1.msra.mxu0 0.0
  %1169 = vmatprep.subr.mxu0 0.0
  %1170 = vmatpush1.msra.mxu0 0.0
  %1171 = vmatprep.subr.mxu0 0.0
  %1172 = vmatpush1.msra.mxu0 0.0
  %1173 = vmatprep.subr.mxu0 0.0
  %1174 = vmatpush1.msra.mxu0 0.0
  %1175 = vmatprep.subr.mxu0 0.0
  %1176 = vmatpush1.msra.mxu0 0.0
  %1177 = vmatprep.subr.mxu0 0.0
  %1178 = vmatpush1.msra.mxu0 0.0
  %1179 = vmatprep.mubr.f32.mxu0 0.0
  %1180 = vmatmul.mubr.f32.gmra.mrb[0].mxu0 %v146
  %v1181 = vpop.f32.mrb[0].mxu0
  %v1182 = vadd.f32 0.0, %v1181
  %v1183 = vpop.f32.mrb[0].mxu0
  %1184 = vmatprep.mubr.f32.mxu0 0.0
  %1185 = vmatmul.mubr.f32.gmra.mrb[0].mxu0 %v149
  %v1186 = vpop.f32.mrb[0].mxu0
  %v1187 = vadd.f32 0.0, %v1186
  %v1188 = vpop.f32.mrb[0].mxu0
  %1189 = vdwg.mxu0
  %s1190 = scalar_lea.vmem %s3, 144
  %v1191 = vld [vmem:[%s1190] sm:$0xff]
  %v1192 = vld [vmem:[%s1190 + $0x8] sm:$0xff]
  %v1193 = vld [vmem:[%s1190 + $0x10] sm:$0xff]
  %v1194 = vld [vmem:[%s1190 + $0x18] sm:$0x1]
  %v1195 = vld [vmem:[%s1190 + $0x20] sm:$0x1]
  %v1196 = vld [vmem:[%s1190 + $0x28] sm:$0x1]
  %v1197 = vadd.f32 %v1191, %v322
  %v1198 = vadd.f32 %v1192, %v322
  %v1199 = vadd.f32 %v1193, %v322
  %v1200 = vadd.f32 %v1194, %v327
  %v1201 = vadd.f32 %v1195, %v327
  %v1202 = vadd.f32 %v1196, %v327
  %v1203 = vadd.f32 %v1197, %v1105
  %v1204 = vadd.f32 %v1198, %v1107
  %v1205 = vadd.f32 %v1199, %v1182
  %v1206 = vadd.f32 %v1200, %v1111
  %v1207 = vadd.f32 %v1201, %v1113
  %v1208 = vadd.f32 %v1202, %v1187
  %s1209 = scalar_lea.vmem %s4, 144
  %1210 = vst [vmem:[%s1209] sm:$0xff] %v1203
  %1211 = vst [vmem:[%s1209 + $0x8] sm:$0xff] %v1204
  %1212 = vst.msk [vmem:[%s1209 + $0x10] sm:$0xff] %vm343, %v1205
  %1213 = vst [vmem:[%s1209 + $0x18] sm:$0x1] %v1206
  %1214 = vst [vmem:[%s1209 + $0x20] sm:$0x1] %v1207
  %1215 = vst.msk [vmem:[%s1209 + $0x28] sm:$0x1] %vm347, %v1208
  // Predicated region
  $region18: #{tpu_custom_call.1} parent=0 // pred_check
    _
  $region19: #{tpu_custom_call.1} parent=0 // pred_check_branch
    %1217 = sbr.rel (0) target = $region21
  $region20: #{tpu_custom_call.1} parent=0 // pred_region
    _
  $region21: #{tpu_custom_call.1} parent=0 // pred_fallthru
    _
  // Predicated region
  $region22: #{tpu_custom_call.1} parent=0 // pred_check
    _
  $region23: #{tpu_custom_call.1} parent=0 // pred_check_branch
    %1219 = sbr.rel (0) target = $region25
  $region24: #{tpu_custom_call.1} parent=0 // pred_region
    _
  $region25: #{tpu_custom_call.1} parent=0 // pred_fallthru
    _

</llo_original>
